<compile_context>
chip_gen: v6e
topology: v6e:2x2x1
jax: 0.10.0
libtpu: 0.0.40
codegen_flags: <defaults>
</compile_context>

<pallas_src>
import functools

import numpy as np
import jax
import jax.numpy as jnp
from jax.experimental import pallas as pl
from jax.experimental.pallas import tpu as pltpu

# ----- synthetic config (NETWORK_CONFIG / ENV_CONFIG) -----
N_PERIODS = 2
N_CHANNELS = 32
N_RES = 2
BOARD_SIZE = 8
BATCH = 2

IN_CHANNELS = N_PERIODS * 2 + 1          # 5
N_ACTIONS = BOARD_SIZE ** 2              # 64
BN_EPS = 1e-5


# --------------------------------------------------------------------------
# host-side helpers
# --------------------------------------------------------------------------
def make_tap_masks(n, h, w):
    """mask[t, m] = 1 iff output position m (= b*h*w + oh*w + ow) has a valid source
    for 3x3 tap t=(dy,dx) under SAME zero padding (so the lane-rotated copy is kept)."""
    hw = h * w
    m = n * hw
    masks = np.zeros((9, m), np.float32)
    for t, (dy, dx) in enumerate([(dy, dx) for dy in range(3) for dx in range(3)]):
        for b in range(n):
            for oh in range(h):
                for ow in range(w):
                    ih, iw = oh + dy - 1, ow + dx - 1
                    if 0 <= ih < h and 0 <= iw < w:
                        masks[t, b * hw + oh * w + ow] = 1.0
    return masks


def conv_bn_params(key, cin, cout, ksize):
    """Conv2d(bias=False) + eval-mode BatchNorm2d, folded.
    Returns (kernel-packed bf16 weight (cout, k*k*cin), bias (cout,1) f32) and the
    f32 OIHW folded weight/bias for the pure-JAX reference."""
    kw, kg, kb, km, kv = jax.random.split(key, 5)
    w = 0.1 * jax.random.normal(kw, (cout, cin, ksize, ksize), jnp.float32)  # PyTorch OIHW
    gamma = 1.0 + 0.1 * jax.random.normal(kg, (cout,), jnp.float32)
    beta = 0.1 * jax.random.normal(kb, (cout,), jnp.float32)
    mean = 0.1 * jax.random.normal(km, (cout,), jnp.float32)
    var = jnp.abs(jax.random.normal(kv, (cout,), jnp.float32)) + 0.5
    scale = gamma / jnp.sqrt(var + BN_EPS)
    w_folded = w * scale[:, None, None, None]
    bias = beta - mean * scale
    # contraction index ordered (kh, kw, cin) to match the in-kernel col construction
    w_packed = jnp.transpose(w_folded, (0, 2, 3, 1)).reshape(cout, ksize * ksize * cin)
    return (w_packed.astype(jnp.bfloat16), bias.reshape(cout, 1)), (w_folded, bias)


def linear_params(key, fin, fout):
    kw, kb = jax.random.split(key)
    w = 0.1 * jax.random.normal(kw, (fout, fin), jnp.float32)   # PyTorch (out, in)
    b = 0.1 * jax.random.normal(kb, (fout,), jnp.float32)
    return w, b


def init_params(key):
    block_cins = tuple([IN_CHANNELS] + [N_CHANNELS] * (N_RES - 1))
    keys = iter(jax.random.split(key, 4 * N_RES + 8))
    kernel_inputs = []
    ref = {"blocks": []}
    for cin in block_cins:
        (w1k, b1k), (w1r, b1r) = conv_bn_params(next(keys), cin, N_CHANNELS, 3)
        (w2k, b2k), (w2r, b2r) = conv_bn_params(next(keys), N_CHANNELS, N_CHANNELS, 3)
        kernel_inputs += [w1k, b1k, w2k, b2k]
        blk = {"w1": w1r, "b1": b1r, "w2": w2r, "b2": b2r, "proj": None}
        if cin != N_CHANNELS:                       # projection shortcut (1x1 conv + BN)
            (wsk, bsk), (wsr, bsr) = conv_bn_params(next(keys), cin, N_CHANNELS, 1)
            kernel_inputs += [wsk, bsk]
            blk["proj"] = (wsr, bsr)
        ref["blocks"].append(blk)
    # policy head: 1x1 conv(->4)+BN, Flatten, ReLU, Linear(4*A, A)
    (wpck, bpck), (wpcr, bpcr) = conv_bn_params(next(keys), N_CHANNELS, 4, 1)
    wpf, bpf = linear_params(next(keys), 4 * N_ACTIONS, N_ACTIONS)
    # value head: 1x1 conv(->2)+BN, Flatten, ReLU, Linear(2*A,256), ReLU, Linear(256,1), Tanh
    (wvck, bvck), (wvcr, bvcr) = conv_bn_params(next(keys), N_CHANNELS, 2, 1)
    wv1, bv1 = linear_params(next(keys), 2 * N_ACTIONS, 256)
    wv2, bv2 = linear_params(next(keys), 256, 1)
    kernel_inputs += [
        wpck, bpck, jnp.transpose(wpf).astype(jnp.bfloat16), bpf.reshape(1, N_ACTIONS),
        wvck, bvck, jnp.transpose(wv1).astype(jnp.bfloat16), bv1.reshape(1, 256),
        jnp.transpose(wv2).astype(jnp.bfloat16), bv2.reshape(1, 1),
    ]
    ref.update(policy_conv=(wpcr, bpcr), policy_fc=(wpf, bpf),
               value_conv=(wvcr, bvcr), value_fc1=(wv1, bv1), value_fc2=(wv2, bv2))
    return tuple(kernel_inputs), ref, block_cins


# --------------------------------------------------------------------------
# fused kernel (entire forward pass, single invocation, everything in VMEM)
# --------------------------------------------------------------------------
def make_az_kernel(block_cins, n_batch, board_h, board_w, n_channels):
    hw = board_h * board_w
    m_total = n_batch * hw
    taps = [(dy, dx) for dy in range(3) for dx in range(3)]

    def kernel(*refs):
        *in_refs, logits_ref, value_ref = refs
        it = iter(in_refs)
        x_ref = next(it)                     # (Cin0, M) f32 input activation
        mask_ref = next(it)                  # (9, M) f32 0/1 boundary masks

        masks_f32 = mask_ref[...]
        mask_rows = [masks_f32[t:t + 1, :].astype(jnp.bfloat16) for t in range(9)]

        def shift_lanes(a, s):
            # out[:, m] = a[:, (m + s) mod M] ; s is a static python int (== jnp.roll(a, -s))
            k = s % m_total
            if k == 0:
                return a
            return jnp.concatenate([a[:, k:], a[:, :k]], axis=1)

        def conv3x3(act_bf, w_ref, b_ref):
            # act_bf: (Cin, M) bf16 -> (Cout, M) f32 pre-activation (SAME padding, BN folded)
            cols = []
            for t, (dy, dx) in enumerate(taps):
                s = (dy - 1) * board_w + (dx - 1)
                piece = shift_lanes(act_bf, s)
                if not (dy == 1 and dx == 1):          # center tap needs no boundary mask
                    piece = piece * mask_rows[t]
                cols.append(piece)
            col = jnp.concatenate(cols, axis=0)        # (9*Cin, M) bf16 im2col
            y = jnp.dot(w_ref[...], col, preferred_element_type=jnp.float32)
            return y + b_ref[...]

        def conv1x1(act_bf, w_ref, b_ref):
            return jnp.dot(w_ref[...], act_bf,
                           preferred_element_type=jnp.float32) + b_ref[...]

        # ---------------- residual tower ----------------
        x = x_ref[...]                                 # (Cin, M) f32
        for cin in block_cins:
            w1, b1, w2, b2 = next(it), next(it), next(it), next(it)
            x_bf = x.astype(jnp.bfloat16)
            h1 = jnp.maximum(conv3x3(x_bf, w1, b1), 0.0)
            h2 = conv3x3(h1.astype(jnp.bfloat16), w2, b2)
            if cin != n_channels:                      # 1x1 projection skip
                wsc, bsc = next(it), next(it)
                res = conv1x1(x_bf, wsc, bsc)
            else:
                res = x
            x = jnp.maximum(h2 + res, 0.0)             # (Cout, M) f32

        # ---------------- heads ----------------
        wpc, bpc, wpf, bpf = next(it), next(it), next(it), next(it)
        wvc, bvc, wv1, bv1, wv2, bv2 = (next(it), next(it), next(it),
                                        next(it), next(it), next(it))

        x_bf = x.astype(jnp.bfloat16)
        p = jnp.maximum(conv1x1(x_bf, wpc, bpc), 0.0)  # (4, M) f32
        v = jnp.maximum(conv1x1(x_bf, wvc, bvc), 0.0)  # (2, M) f32

        def flatten_nchw(a):
            # (C, n*hw) -> (n, C*hw) bf16, matching torch.nn.Flatten on an NCHW tensor.
            rows = []
            for b in range(n_batch):
                segs = [a[c:c + 1, b * hw:(b + 1) * hw] for c in range(a.shape[0])]
                rows.append(jnp.concatenate(segs, axis=1) if len(segs) > 1 else segs[0])
            out = jnp.concatenate(rows, axis=0) if len(rows) > 1 else rows[0]
            return out.astype(jnp.bfloat16)

        p_flat = flatten_nchw(p)                       # (n, 4*hw) bf16
        v_flat = flatten_nchw(v)                       # (n, 2*hw) bf16

        logits_ref[...] = jnp.dot(p_flat, wpf[...],
                                  preferred_element_type=jnp.float32) + bpf[...]
        v1 = jnp.maximum(jnp.dot(v_flat, wv1[...],
                                 preferred_element_type=jnp.float32) + bv1[...], 0.0)
        value_ref[...] = jnp.tanh(
            jnp.dot(v1.astype(jnp.bfloat16), wv2[...],
                    preferred_element_type=jnp.float32) + bv2[...])

    return kernel


# --------------------------------------------------------------------------
# forward pass: one pallas_call, everything fused
# --------------------------------------------------------------------------
@functools.partial(jax.jit, static_argnums=(2,))
def az_forward(kernel_params, x_nchw, block_cins):
    n, c, h, w = x_nchw.shape
    m = n * h * w
    # lane-dense (C, M) layout: m = batch*h*w + oh*w + ow  (M = 128 lanes for batch=2)
    x_cm = jnp.transpose(x_nchw, (1, 0, 2, 3)).reshape(c, m)
    masks = jnp.asarray(make_tap_masks(n, h, w), jnp.float32)          # (9, M) 0/1
    inputs = (x_cm, masks) + tuple(kernel_params)

    kernel = make_az_kernel(block_cins, n, h, w, N_CHANNELS)
    logits, value = pl.pallas_call(
        kernel,
        out_shape=(jax.ShapeDtypeStruct((n, N_ACTIONS), jnp.float32),
                   jax.ShapeDtypeStruct((n, 1), jnp.float32)),
        in_specs=[pl.BlockSpec(memory_space=pltpu.MemorySpace.VMEM)] * len(inputs),
        out_specs=(pl.BlockSpec(memory_space=pltpu.MemorySpace.VMEM),
                   pl.BlockSpec(memory_space=pltpu.MemorySpace.VMEM)),
    )(*inputs)
    return logits, value


# --------------------------------------------------------------------------
# pure-JAX reference (f32, lax.conv) for a structural correctness check
# --------------------------------------------------------------------------
def ref_forward(ref_params, x):
    def conv2d(a, w, b):
        y = jax.lax.conv_general_dilated(a, w, window_strides=(1, 1), padding="SAME",
                                         dimension_numbers=("NCHW", "OIHW", "NCHW"))
        return y + b[None, :, None, None]

    h = x
    for blk in ref_params["blocks"]:
        t = jax.nn.relu(conv2d(h, blk["w1"], blk["b1"]))
        t = conv2d(t, blk["w2"], blk["b2"])
        sc = conv2d(h, *blk["proj"]) if blk["proj"] is not None else h
        h = jax.nn.relu(t + sc)
    n = h.shape[0]
    p = jax.nn.relu(conv2d(h, *ref_params["policy_conv"]).reshape(n, -1))
    wpf, bpf = ref_params["policy_fc"]
    logits = p @ wpf.T + bpf
    v = jax.nn.relu(conv2d(h, *ref_params["value_conv"]).reshape(n, -1))
    wv1, bv1 = ref_params["value_fc1"]
    wv2, bv2 = ref_params["value_fc2"]
    v = jax.nn.relu(v @ wv1.T + bv1)
    value = jnp.tanh(v @ wv2.T + bv2)
    return logits, value


if __name__ == "__main__":
    key = jax.random.PRNGKey(0)
    k_params, k_x = jax.random.split(key)
    kernel_params, ref_params, block_cins = init_params(k_params)
    x = jax.random.normal(k_x, (BATCH, IN_CHANNELS, BOARD_SIZE, BOARD_SIZE), jnp.float32)

    logits, value = az_forward(kernel_params, x, block_cins)
    jax.block_until_ready((logits, value))

    assert logits.shape == (BATCH, N_ACTIONS) and value.shape == (BATCH, 1)
    assert bool(jnp.all(jnp.isfinite(logits))) and bool(jnp.all(jnp.abs(value) <= 1.0))

    # structural correctness vs. f32 reference (loose tol: kernel runs bf16 on the MXU)
    ref_logits, ref_value = ref_forward(ref_params, x)
    np.testing.assert_allclose(np.asarray(logits), np.asarray(ref_logits),
                               rtol=7e-2, atol=7e-2)
    np.testing.assert_allclose(np.asarray(value), np.asarray(ref_value),
                               rtol=7e-2, atol=7e-2)
    print("KERNEL_OK")
</pallas_src>

<mosaic_0001>
module attributes {stable_mosaic.version = 11 : i64} {
  func.func @kernel(%arg0: memref<5x128xf32, #tpu.memory_space<vmem>>, %arg1: memref<9x128xf32, #tpu.memory_space<vmem>>, %arg2: memref<32x45xbf16, #tpu.memory_space<vmem>>, %arg3: memref<32x1xf32, #tpu.memory_space<vmem>>, %arg4: memref<32x288xbf16, #tpu.memory_space<vmem>>, %arg5: memref<32x1xf32, #tpu.memory_space<vmem>>, %arg6: memref<32x5xbf16, #tpu.memory_space<vmem>>, %arg7: memref<32x1xf32, #tpu.memory_space<vmem>>, %arg8: memref<32x288xbf16, #tpu.memory_space<vmem>>, %arg9: memref<32x1xf32, #tpu.memory_space<vmem>>, %arg10: memref<32x288xbf16, #tpu.memory_space<vmem>>, %arg11: memref<32x1xf32, #tpu.memory_space<vmem>>, %arg12: memref<4x32xbf16, #tpu.memory_space<vmem>>, %arg13: memref<4x1xf32, #tpu.memory_space<vmem>>, %arg14: memref<256x64xbf16, #tpu.memory_space<vmem>>, %arg15: memref<1x64xf32, #tpu.memory_space<vmem>>, %arg16: memref<2x32xbf16, #tpu.memory_space<vmem>>, %arg17: memref<2x1xf32, #tpu.memory_space<vmem>>, %arg18: memref<128x256xbf16, #tpu.memory_space<vmem>>, %arg19: memref<1x256xf32, #tpu.memory_space<vmem>>, %arg20: memref<256x1xbf16, #tpu.memory_space<vmem>>, %arg21: memref<1x1xf32, #tpu.memory_space<vmem>>, %arg22: memref<2x64xf32, #tpu.memory_space<vmem>>, %arg23: memref<2x1xf32, #tpu.memory_space<vmem>>) attributes {dimension_semantics = [], scalar_prefetch = 0 : i64, scratch_operands = 0 : i64, tpu.core_type = #tpu.core_type<tc>} {
    %c0 = arith.constant 0 : index
    %c0_0 = arith.constant 0 : index
    %0 = vector.load %arg1[%c0, %c0_0] : memref<9x128xf32, #tpu.memory_space<vmem>>, vector<9x128xf32>
    %1 = vector.extract_strided_slice %0 {offsets = [0, 0], sizes = [1, 128], strides = [1, 1]} : vector<9x128xf32> to vector<1x128xf32>
    %2 = arith.truncf %1 : vector<1x128xf32> to vector<1x128xbf16>
    %3 = vector.extract_strided_slice %0 {offsets = [1, 0], sizes = [1, 128], strides = [1, 1]} : vector<9x128xf32> to vector<1x128xf32>
    %4 = arith.truncf %3 : vector<1x128xf32> to vector<1x128xbf16>
    %5 = vector.extract_strided_slice %0 {offsets = [2, 0], sizes = [1, 128], strides = [1, 1]} : vector<9x128xf32> to vector<1x128xf32>
    %6 = arith.truncf %5 : vector<1x128xf32> to vector<1x128xbf16>
    %7 = vector.extract_strided_slice %0 {offsets = [3, 0], sizes = [1, 128], strides = [1, 1]} : vector<9x128xf32> to vector<1x128xf32>
    %8 = arith.truncf %7 : vector<1x128xf32> to vector<1x128xbf16>
    %9 = vector.extract_strided_slice %0 {offsets = [5, 0], sizes = [1, 128], strides = [1, 1]} : vector<9x128xf32> to vector<1x128xf32>
    %10 = arith.truncf %9 : vector<1x128xf32> to vector<1x128xbf16>
    %11 = vector.extract_strided_slice %0 {offsets = [6, 0], sizes = [1, 128], strides = [1, 1]} : vector<9x128xf32> to vector<1x128xf32>
    %12 = arith.truncf %11 : vector<1x128xf32> to vector<1x128xbf16>
    %13 = vector.extract_strided_slice %0 {offsets = [7, 0], sizes = [1, 128], strides = [1, 1]} : vector<9x128xf32> to vector<1x128xf32>
    %14 = arith.truncf %13 : vector<1x128xf32> to vector<1x128xbf16>
    %15 = vector.extract_strided_slice %0 {offsets = [8, 0], sizes = [1, 128], strides = [1, 1]} : vector<9x128xf32> to vector<1x128xf32>
    %16 = arith.truncf %15 : vector<1x128xf32> to vector<1x128xbf16>
    %c0_1 = arith.constant 0 : index
    %c0_2 = arith.constant 0 : index
    %17 = vector.load %arg0[%c0_1, %c0_2] : memref<5x128xf32, #tpu.memory_space<vmem>>, vector<5x128xf32>
    %18 = arith.truncf %17 : vector<5x128xf32> to vector<5x128xbf16>
    %19 = vector.extract_strided_slice %18 {offsets = [0, 119], sizes = [5, 9], strides = [1, 1]} : vector<5x128xbf16> to vector<5x9xbf16>
    %20 = vector.extract_strided_slice %18 {offsets = [0, 0], sizes = [5, 119], strides = [1, 1]} : vector<5x128xbf16> to vector<5x119xbf16>
    %21 = tpu.concatenate %19, %20 in 1 : vector<5x9xbf16>, vector<5x119xbf16> -> vector<5x128xbf16>
    %22 = vector.broadcast %2 : vector<1x128xbf16> to vector<5x128xbf16>
    %23 = arith.mulf %21, %22 : vector<5x128xbf16>
    %24 = vector.extract_strided_slice %18 {offsets = [0, 120], sizes = [5, 8], strides = [1, 1]} : vector<5x128xbf16> to vector<5x8xbf16>
    %25 = vector.extract_strided_slice %18 {offsets = [0, 0], sizes = [5, 120], strides = [1, 1]} : vector<5x128xbf16> to vector<5x120xbf16>
    %26 = tpu.concatenate %24, %25 in 1 : vector<5x8xbf16>, vector<5x120xbf16> -> vector<5x128xbf16>
    %27 = vector.broadcast %4 : vector<1x128xbf16> to vector<5x128xbf16>
    %28 = arith.mulf %26, %27 : vector<5x128xbf16>
    %29 = vector.extract_strided_slice %18 {offsets = [0, 121], sizes = [5, 7], strides = [1, 1]} : vector<5x128xbf16> to vector<5x7xbf16>
    %30 = vector.extract_strided_slice %18 {offsets = [0, 0], sizes = [5, 121], strides = [1, 1]} : vector<5x128xbf16> to vector<5x121xbf16>
    %31 = tpu.concatenate %29, %30 in 1 : vector<5x7xbf16>, vector<5x121xbf16> -> vector<5x128xbf16>
    %32 = vector.broadcast %6 : vector<1x128xbf16> to vector<5x128xbf16>
    %33 = arith.mulf %31, %32 : vector<5x128xbf16>
    %34 = vector.extract_strided_slice %18 {offsets = [0, 127], sizes = [5, 1], strides = [1, 1]} : vector<5x128xbf16> to vector<5x1xbf16>
    %35 = vector.extract_strided_slice %18 {offsets = [0, 0], sizes = [5, 127], strides = [1, 1]} : vector<5x128xbf16> to vector<5x127xbf16>
    %36 = tpu.concatenate %34, %35 in 1 : vector<5x1xbf16>, vector<5x127xbf16> -> vector<5x128xbf16>
    %37 = vector.broadcast %8 : vector<1x128xbf16> to vector<5x128xbf16>
    %38 = arith.mulf %36, %37 : vector<5x128xbf16>
    %39 = vector.extract_strided_slice %18 {offsets = [0, 1], sizes = [5, 127], strides = [1, 1]} : vector<5x128xbf16> to vector<5x127xbf16>
    %40 = vector.extract_strided_slice %18 {offsets = [0, 0], sizes = [5, 1], strides = [1, 1]} : vector<5x128xbf16> to vector<5x1xbf16>
    %41 = tpu.concatenate %39, %40 in 1 : vector<5x127xbf16>, vector<5x1xbf16> -> vector<5x128xbf16>
    %42 = vector.broadcast %10 : vector<1x128xbf16> to vector<5x128xbf16>
    %43 = arith.mulf %41, %42 : vector<5x128xbf16>
    %44 = vector.extract_strided_slice %18 {offsets = [0, 7], sizes = [5, 121], strides = [1, 1]} : vector<5x128xbf16> to vector<5x121xbf16>
    %45 = vector.extract_strided_slice %18 {offsets = [0, 0], sizes = [5, 7], strides = [1, 1]} : vector<5x128xbf16> to vector<5x7xbf16>
    %46 = tpu.concatenate %44, %45 in 1 : vector<5x121xbf16>, vector<5x7xbf16> -> vector<5x128xbf16>
    %47 = vector.broadcast %12 : vector<1x128xbf16> to vector<5x128xbf16>
    %48 = arith.mulf %46, %47 : vector<5x128xbf16>
    %49 = vector.extract_strided_slice %18 {offsets = [0, 8], sizes = [5, 120], strides = [1, 1]} : vector<5x128xbf16> to vector<5x120xbf16>
    %50 = vector.extract_strided_slice %18 {offsets = [0, 0], sizes = [5, 8], strides = [1, 1]} : vector<5x128xbf16> to vector<5x8xbf16>
    %51 = tpu.concatenate %49, %50 in 1 : vector<5x120xbf16>, vector<5x8xbf16> -> vector<5x128xbf16>
    %52 = vector.broadcast %14 : vector<1x128xbf16> to vector<5x128xbf16>
    %53 = arith.mulf %51, %52 : vector<5x128xbf16>
    %54 = vector.extract_strided_slice %18 {offsets = [0, 9], sizes = [5, 119], strides = [1, 1]} : vector<5x128xbf16> to vector<5x119xbf16>
    %55 = vector.extract_strided_slice %18 {offsets = [0, 0], sizes = [5, 9], strides = [1, 1]} : vector<5x128xbf16> to vector<5x9xbf16>
    %56 = tpu.concatenate %54, %55 in 1 : vector<5x119xbf16>, vector<5x9xbf16> -> vector<5x128xbf16>
    %57 = vector.broadcast %16 : vector<1x128xbf16> to vector<5x128xbf16>
    %58 = arith.mulf %56, %57 : vector<5x128xbf16>
    %59 = tpu.concatenate %23, %28, %33, %38, %18, %43, %48, %53, %58 in 0 : vector<5x128xbf16>, vector<5x128xbf16>, vector<5x128xbf16>, vector<5x128xbf16>, vector<5x128xbf16>, vector<5x128xbf16>, vector<5x128xbf16>, vector<5x128xbf16>, vector<5x128xbf16> -> vector<45x128xbf16>
    %c0_3 = arith.constant 0 : index
    %c0_4 = arith.constant 0 : index
    %60 = vector.load %arg2[%c0_3, %c0_4] : memref<32x45xbf16, #tpu.memory_space<vmem>>, vector<32x45xbf16>
    %cst = arith.constant dense<0.000000e+00> : vector<32x128xf32>
    %61 = tpu.matmul %60, %59, %cst {dimension_numbers = #tpu.dot_dimension_numbers<[1], [0], [0], [1], [0, 0, 1, 1], [], []>} : vector<32x45xbf16>, vector<45x128xbf16>, vector<32x128xf32> -> vector<32x128xf32>
    %c0_5 = arith.constant 0 : index
    %c0_6 = arith.constant 0 : index
    %62 = vector.load %arg3[%c0_5, %c0_6] : memref<32x1xf32, #tpu.memory_space<vmem>>, vector<32x1xf32>
    %63 = vector.broadcast %62 : vector<32x1xf32> to vector<32x128xf32>
    %64 = arith.addf %61, %63 : vector<32x128xf32>
    %cst_7 = arith.constant 0.000000e+00 : f32
    %65 = vector.broadcast %cst_7 : f32 to vector<32x128xf32>
    %66 = arith.maximumf %64, %65 : vector<32x128xf32>
    %67 = arith.truncf %66 : vector<32x128xf32> to vector<32x128xbf16>
    %68 = vector.extract_strided_slice %67 {offsets = [0, 119], sizes = [32, 9], strides = [1, 1]} : vector<32x128xbf16> to vector<32x9xbf16>
    %69 = vector.extract_strided_slice %67 {offsets = [0, 0], sizes = [32, 119], strides = [1, 1]} : vector<32x128xbf16> to vector<32x119xbf16>
    %70 = tpu.concatenate %68, %69 in 1 : vector<32x9xbf16>, vector<32x119xbf16> -> vector<32x128xbf16>
    %71 = vector.broadcast %2 : vector<1x128xbf16> to vector<32x128xbf16>
    %72 = arith.mulf %70, %71 : vector<32x128xbf16>
    %73 = vector.extract_strided_slice %67 {offsets = [0, 120], sizes = [32, 8], strides = [1, 1]} : vector<32x128xbf16> to vector<32x8xbf16>
    %74 = vector.extract_strided_slice %67 {offsets = [0, 0], sizes = [32, 120], strides = [1, 1]} : vector<32x128xbf16> to vector<32x120xbf16>
    %75 = tpu.concatenate %73, %74 in 1 : vector<32x8xbf16>, vector<32x120xbf16> -> vector<32x128xbf16>
    %76 = vector.broadcast %4 : vector<1x128xbf16> to vector<32x128xbf16>
    %77 = arith.mulf %75, %76 : vector<32x128xbf16>
    %78 = vector.extract_strided_slice %67 {offsets = [0, 121], sizes = [32, 7], strides = [1, 1]} : vector<32x128xbf16> to vector<32x7xbf16>
    %79 = vector.extract_strided_slice %67 {offsets = [0, 0], sizes = [32, 121], strides = [1, 1]} : vector<32x128xbf16> to vector<32x121xbf16>
    %80 = tpu.concatenate %78, %79 in 1 : vector<32x7xbf16>, vector<32x121xbf16> -> vector<32x128xbf16>
    %81 = vector.broadcast %6 : vector<1x128xbf16> to vector<32x128xbf16>
    %82 = arith.mulf %80, %81 : vector<32x128xbf16>
    %83 = vector.extract_strided_slice %67 {offsets = [0, 127], sizes = [32, 1], strides = [1, 1]} : vector<32x128xbf16> to vector<32x1xbf16>
    %84 = vector.extract_strided_slice %67 {offsets = [0, 0], sizes = [32, 127], strides = [1, 1]} : vector<32x128xbf16> to vector<32x127xbf16>
    %85 = tpu.concatenate %83, %84 in 1 : vector<32x1xbf16>, vector<32x127xbf16> -> vector<32x128xbf16>
    %86 = vector.broadcast %8 : vector<1x128xbf16> to vector<32x128xbf16>
    %87 = arith.mulf %85, %86 : vector<32x128xbf16>
    %88 = vector.extract_strided_slice %67 {offsets = [0, 1], sizes = [32, 127], strides = [1, 1]} : vector<32x128xbf16> to vector<32x127xbf16>
    %89 = vector.extract_strided_slice %67 {offsets = [0, 0], sizes = [32, 1], strides = [1, 1]} : vector<32x128xbf16> to vector<32x1xbf16>
    %90 = tpu.concatenate %88, %89 in 1 : vector<32x127xbf16>, vector<32x1xbf16> -> vector<32x128xbf16>
    %91 = vector.broadcast %10 : vector<1x128xbf16> to vector<32x128xbf16>
    %92 = arith.mulf %90, %91 : vector<32x128xbf16>
    %93 = vector.extract_strided_slice %67 {offsets = [0, 7], sizes = [32, 121], strides = [1, 1]} : vector<32x128xbf16> to vector<32x121xbf16>
    %94 = vector.extract_strided_slice %67 {offsets = [0, 0], sizes = [32, 7], strides = [1, 1]} : vector<32x128xbf16> to vector<32x7xbf16>
    %95 = tpu.concatenate %93, %94 in 1 : vector<32x121xbf16>, vector<32x7xbf16> -> vector<32x128xbf16>
    %96 = vector.broadcast %12 : vector<1x128xbf16> to vector<32x128xbf16>
    %97 = arith.mulf %95, %96 : vector<32x128xbf16>
    %98 = vector.extract_strided_slice %67 {offsets = [0, 8], sizes = [32, 120], strides = [1, 1]} : vector<32x128xbf16> to vector<32x120xbf16>
    %99 = vector.extract_strided_slice %67 {offsets = [0, 0], sizes = [32, 8], strides = [1, 1]} : vector<32x128xbf16> to vector<32x8xbf16>
    %100 = tpu.concatenate %98, %99 in 1 : vector<32x120xbf16>, vector<32x8xbf16> -> vector<32x128xbf16>
    %101 = vector.broadcast %14 : vector<1x128xbf16> to vector<32x128xbf16>
    %102 = arith.mulf %100, %101 : vector<32x128xbf16>
    %103 = vector.extract_strided_slice %67 {offsets = [0, 9], sizes = [32, 119], strides = [1, 1]} : vector<32x128xbf16> to vector<32x119xbf16>
    %104 = vector.extract_strided_slice %67 {offsets = [0, 0], sizes = [32, 9], strides = [1, 1]} : vector<32x128xbf16> to vector<32x9xbf16>
    %105 = tpu.concatenate %103, %104 in 1 : vector<32x119xbf16>, vector<32x9xbf16> -> vector<32x128xbf16>
    %106 = vector.broadcast %16 : vector<1x128xbf16> to vector<32x128xbf16>
    %107 = arith.mulf %105, %106 : vector<32x128xbf16>
    %108 = tpu.concatenate %72, %77, %82, %87, %67, %92, %97, %102, %107 in 0 : vector<32x128xbf16>, vector<32x128xbf16>, vector<32x128xbf16>, vector<32x128xbf16>, vector<32x128xbf16>, vector<32x128xbf16>, vector<32x128xbf16>, vector<32x128xbf16>, vector<32x128xbf16> -> vector<288x128xbf16>
    %c0_8 = arith.constant 0 : index
    %c0_9 = arith.constant 0 : index
    %109 = vector.load %arg4[%c0_8, %c0_9] : memref<32x288xbf16, #tpu.memory_space<vmem>>, vector<32x288xbf16>
    %cst_10 = arith.constant dense<0.000000e+00> : vector<32x128xf32>
    %110 = tpu.matmul %109, %108, %cst_10 {dimension_numbers = #tpu.dot_dimension_numbers<[1], [0], [0], [1], [0, 0, 1, 1], [], []>} : vector<32x288xbf16>, vector<288x128xbf16>, vector<32x128xf32> -> vector<32x128xf32>
    %c0_11 = arith.constant 0 : index
    %c0_12 = arith.constant 0 : index
    %111 = vector.load %arg5[%c0_11, %c0_12] : memref<32x1xf32, #tpu.memory_space<vmem>>, vector<32x1xf32>
    %112 = vector.broadcast %111 : vector<32x1xf32> to vector<32x128xf32>
    %113 = arith.addf %110, %112 : vector<32x128xf32>
    %c0_13 = arith.constant 0 : index
    %c0_14 = arith.constant 0 : index
    %114 = vector.load %arg6[%c0_13, %c0_14] : memref<32x5xbf16, #tpu.memory_space<vmem>>, vector<32x5xbf16>
    %cst_15 = arith.constant dense<0.000000e+00> : vector<32x128xf32>
    %115 = tpu.matmul %114, %18, %cst_15 {dimension_numbers = #tpu.dot_dimension_numbers<[1], [0], [0], [1], [0, 0, 1, 1], [], []>} : vector<32x5xbf16>, vector<5x128xbf16>, vector<32x128xf32> -> vector<32x128xf32>
    %c0_16 = arith.constant 0 : index
    %c0_17 = arith.constant 0 : index
    %116 = vector.load %arg7[%c0_16, %c0_17] : memref<32x1xf32, #tpu.memory_space<vmem>>, vector<32x1xf32>
    %117 = vector.broadcast %116 : vector<32x1xf32> to vector<32x128xf32>
    %118 = arith.addf %115, %117 : vector<32x128xf32>
    %119 = arith.addf %113, %118 : vector<32x128xf32>
    %cst_18 = arith.constant 0.000000e+00 : f32
    %120 = vector.broadcast %cst_18 : f32 to vector<32x128xf32>
    %121 = arith.maximumf %119, %120 : vector<32x128xf32>
    %122 = arith.truncf %121 : vector<32x128xf32> to vector<32x128xbf16>
    %123 = vector.extract_strided_slice %122 {offsets = [0, 119], sizes = [32, 9], strides = [1, 1]} : vector<32x128xbf16> to vector<32x9xbf16>
    %124 = vector.extract_strided_slice %122 {offsets = [0, 0], sizes = [32, 119], strides = [1, 1]} : vector<32x128xbf16> to vector<32x119xbf16>
    %125 = tpu.concatenate %123, %124 in 1 : vector<32x9xbf16>, vector<32x119xbf16> -> vector<32x128xbf16>
    %126 = vector.broadcast %2 : vector<1x128xbf16> to vector<32x128xbf16>
    %127 = arith.mulf %125, %126 : vector<32x128xbf16>
    %128 = vector.extract_strided_slice %122 {offsets = [0, 120], sizes = [32, 8], strides = [1, 1]} : vector<32x128xbf16> to vector<32x8xbf16>
    %129 = vector.extract_strided_slice %122 {offsets = [0, 0], sizes = [32, 120], strides = [1, 1]} : vector<32x128xbf16> to vector<32x120xbf16>
    %130 = tpu.concatenate %128, %129 in 1 : vector<32x8xbf16>, vector<32x120xbf16> -> vector<32x128xbf16>
    %131 = vector.broadcast %4 : vector<1x128xbf16> to vector<32x128xbf16>
    %132 = arith.mulf %130, %131 : vector<32x128xbf16>
    %133 = vector.extract_strided_slice %122 {offsets = [0, 121], sizes = [32, 7], strides = [1, 1]} : vector<32x128xbf16> to vector<32x7xbf16>
    %134 = vector.extract_strided_slice %122 {offsets = [0, 0], sizes = [32, 121], strides = [1, 1]} : vector<32x128xbf16> to vector<32x121xbf16>
    %135 = tpu.concatenate %133, %134 in 1 : vector<32x7xbf16>, vector<32x121xbf16> -> vector<32x128xbf16>
    %136 = vector.broadcast %6 : vector<1x128xbf16> to vector<32x128xbf16>
    %137 = arith.mulf %135, %136 : vector<32x128xbf16>
    %138 = vector.extract_strided_slice %122 {offsets = [0, 127], sizes = [32, 1], strides = [1, 1]} : vector<32x128xbf16> to vector<32x1xbf16>
    %139 = vector.extract_strided_slice %122 {offsets = [0, 0], sizes = [32, 127], strides = [1, 1]} : vector<32x128xbf16> to vector<32x127xbf16>
    %140 = tpu.concatenate %138, %139 in 1 : vector<32x1xbf16>, vector<32x127xbf16> -> vector<32x128xbf16>
    %141 = vector.broadcast %8 : vector<1x128xbf16> to vector<32x128xbf16>
    %142 = arith.mulf %140, %141 : vector<32x128xbf16>
    %143 = vector.extract_strided_slice %122 {offsets = [0, 1], sizes = [32, 127], strides = [1, 1]} : vector<32x128xbf16> to vector<32x127xbf16>
    %144 = vector.extract_strided_slice %122 {offsets = [0, 0], sizes = [32, 1], strides = [1, 1]} : vector<32x128xbf16> to vector<32x1xbf16>
    %145 = tpu.concatenate %143, %144 in 1 : vector<32x127xbf16>, vector<32x1xbf16> -> vector<32x128xbf16>
    %146 = vector.broadcast %10 : vector<1x128xbf16> to vector<32x128xbf16>
    %147 = arith.mulf %145, %146 : vector<32x128xbf16>
    %148 = vector.extract_strided_slice %122 {offsets = [0, 7], sizes = [32, 121], strides = [1, 1]} : vector<32x128xbf16> to vector<32x121xbf16>
    %149 = vector.extract_strided_slice %122 {offsets = [0, 0], sizes = [32, 7], strides = [1, 1]} : vector<32x128xbf16> to vector<32x7xbf16>
    %150 = tpu.concatenate %148, %149 in 1 : vector<32x121xbf16>, vector<32x7xbf16> -> vector<32x128xbf16>
    %151 = vector.broadcast %12 : vector<1x128xbf16> to vector<32x128xbf16>
    %152 = arith.mulf %150, %151 : vector<32x128xbf16>
    %153 = vector.extract_strided_slice %122 {offsets = [0, 8], sizes = [32, 120], strides = [1, 1]} : vector<32x128xbf16> to vector<32x120xbf16>
    %154 = vector.extract_strided_slice %122 {offsets = [0, 0], sizes = [32, 8], strides = [1, 1]} : vector<32x128xbf16> to vector<32x8xbf16>
    %155 = tpu.concatenate %153, %154 in 1 : vector<32x120xbf16>, vector<32x8xbf16> -> vector<32x128xbf16>
    %156 = vector.broadcast %14 : vector<1x128xbf16> to vector<32x128xbf16>
    %157 = arith.mulf %155, %156 : vector<32x128xbf16>
    %158 = vector.extract_strided_slice %122 {offsets = [0, 9], sizes = [32, 119], strides = [1, 1]} : vector<32x128xbf16> to vector<32x119xbf16>
    %159 = vector.extract_strided_slice %122 {offsets = [0, 0], sizes = [32, 9], strides = [1, 1]} : vector<32x128xbf16> to vector<32x9xbf16>
    %160 = tpu.concatenate %158, %159 in 1 : vector<32x119xbf16>, vector<32x9xbf16> -> vector<32x128xbf16>
    %161 = vector.broadcast %16 : vector<1x128xbf16> to vector<32x128xbf16>
    %162 = arith.mulf %160, %161 : vector<32x128xbf16>
    %163 = tpu.concatenate %127, %132, %137, %142, %122, %147, %152, %157, %162 in 0 : vector<32x128xbf16>, vector<32x128xbf16>, vector<32x128xbf16>, vector<32x128xbf16>, vector<32x128xbf16>, vector<32x128xbf16>, vector<32x128xbf16>, vector<32x128xbf16>, vector<32x128xbf16> -> vector<288x128xbf16>
    %c0_19 = arith.constant 0 : index
    %c0_20 = arith.constant 0 : index
    %164 = vector.load %arg8[%c0_19, %c0_20] : memref<32x288xbf16, #tpu.memory_space<vmem>>, vector<32x288xbf16>
    %cst_21 = arith.constant dense<0.000000e+00> : vector<32x128xf32>
    %165 = tpu.matmul %164, %163, %cst_21 {dimension_numbers = #tpu.dot_dimension_numbers<[1], [0], [0], [1], [0, 0, 1, 1], [], []>} : vector<32x288xbf16>, vector<288x128xbf16>, vector<32x128xf32> -> vector<32x128xf32>
    %c0_22 = arith.constant 0 : index
    %c0_23 = arith.constant 0 : index
    %166 = vector.load %arg9[%c0_22, %c0_23] : memref<32x1xf32, #tpu.memory_space<vmem>>, vector<32x1xf32>
    %167 = vector.broadcast %166 : vector<32x1xf32> to vector<32x128xf32>
    %168 = arith.addf %165, %167 : vector<32x128xf32>
    %cst_24 = arith.constant 0.000000e+00 : f32
    %169 = vector.broadcast %cst_24 : f32 to vector<32x128xf32>
    %170 = arith.maximumf %168, %169 : vector<32x128xf32>
    %171 = arith.truncf %170 : vector<32x128xf32> to vector<32x128xbf16>
    %172 = vector.extract_strided_slice %171 {offsets = [0, 119], sizes = [32, 9], strides = [1, 1]} : vector<32x128xbf16> to vector<32x9xbf16>
    %173 = vector.extract_strided_slice %171 {offsets = [0, 0], sizes = [32, 119], strides = [1, 1]} : vector<32x128xbf16> to vector<32x119xbf16>
    %174 = tpu.concatenate %172, %173 in 1 : vector<32x9xbf16>, vector<32x119xbf16> -> vector<32x128xbf16>
    %175 = vector.broadcast %2 : vector<1x128xbf16> to vector<32x128xbf16>
    %176 = arith.mulf %174, %175 : vector<32x128xbf16>
    %177 = vector.extract_strided_slice %171 {offsets = [0, 120], sizes = [32, 8], strides = [1, 1]} : vector<32x128xbf16> to vector<32x8xbf16>
    %178 = vector.extract_strided_slice %171 {offsets = [0, 0], sizes = [32, 120], strides = [1, 1]} : vector<32x128xbf16> to vector<32x120xbf16>
    %179 = tpu.concatenate %177, %178 in 1 : vector<32x8xbf16>, vector<32x120xbf16> -> vector<32x128xbf16>
    %180 = vector.broadcast %4 : vector<1x128xbf16> to vector<32x128xbf16>
    %181 = arith.mulf %179, %180 : vector<32x128xbf16>
    %182 = vector.extract_strided_slice %171 {offsets = [0, 121], sizes = [32, 7], strides = [1, 1]} : vector<32x128xbf16> to vector<32x7xbf16>
    %183 = vector.extract_strided_slice %171 {offsets = [0, 0], sizes = [32, 121], strides = [1, 1]} : vector<32x128xbf16> to vector<32x121xbf16>
    %184 = tpu.concatenate %182, %183 in 1 : vector<32x7xbf16>, vector<32x121xbf16> -> vector<32x128xbf16>
    %185 = vector.broadcast %6 : vector<1x128xbf16> to vector<32x128xbf16>
    %186 = arith.mulf %184, %185 : vector<32x128xbf16>
    %187 = vector.extract_strided_slice %171 {offsets = [0, 127], sizes = [32, 1], strides = [1, 1]} : vector<32x128xbf16> to vector<32x1xbf16>
    %188 = vector.extract_strided_slice %171 {offsets = [0, 0], sizes = [32, 127], strides = [1, 1]} : vector<32x128xbf16> to vector<32x127xbf16>
    %189 = tpu.concatenate %187, %188 in 1 : vector<32x1xbf16>, vector<32x127xbf16> -> vector<32x128xbf16>
    %190 = vector.broadcast %8 : vector<1x128xbf16> to vector<32x128xbf16>
    %191 = arith.mulf %189, %190 : vector<32x128xbf16>
    %192 = vector.extract_strided_slice %171 {offsets = [0, 1], sizes = [32, 127], strides = [1, 1]} : vector<32x128xbf16> to vector<32x127xbf16>
    %193 = vector.extract_strided_slice %171 {offsets = [0, 0], sizes = [32, 1], strides = [1, 1]} : vector<32x128xbf16> to vector<32x1xbf16>
    %194 = tpu.concatenate %192, %193 in 1 : vector<32x127xbf16>, vector<32x1xbf16> -> vector<32x128xbf16>
    %195 = vector.broadcast %10 : vector<1x128xbf16> to vector<32x128xbf16>
    %196 = arith.mulf %194, %195 : vector<32x128xbf16>
    %197 = vector.extract_strided_slice %171 {offsets = [0, 7], sizes = [32, 121], strides = [1, 1]} : vector<32x128xbf16> to vector<32x121xbf16>
    %198 = vector.extract_strided_slice %171 {offsets = [0, 0], sizes = [32, 7], strides = [1, 1]} : vector<32x128xbf16> to vector<32x7xbf16>
    %199 = tpu.concatenate %197, %198 in 1 : vector<32x121xbf16>, vector<32x7xbf16> -> vector<32x128xbf16>
    %200 = vector.broadcast %12 : vector<1x128xbf16> to vector<32x128xbf16>
    %201 = arith.mulf %199, %200 : vector<32x128xbf16>
    %202 = vector.extract_strided_slice %171 {offsets = [0, 8], sizes = [32, 120], strides = [1, 1]} : vector<32x128xbf16> to vector<32x120xbf16>
    %203 = vector.extract_strided_slice %171 {offsets = [0, 0], sizes = [32, 8], strides = [1, 1]} : vector<32x128xbf16> to vector<32x8xbf16>
    %204 = tpu.concatenate %202, %203 in 1 : vector<32x120xbf16>, vector<32x8xbf16> -> vector<32x128xbf16>
    %205 = vector.broadcast %14 : vector<1x128xbf16> to vector<32x128xbf16>
    %206 = arith.mulf %204, %205 : vector<32x128xbf16>
    %207 = vector.extract_strided_slice %171 {offsets = [0, 9], sizes = [32, 119], strides = [1, 1]} : vector<32x128xbf16> to vector<32x119xbf16>
    %208 = vector.extract_strided_slice %171 {offsets = [0, 0], sizes = [32, 9], strides = [1, 1]} : vector<32x128xbf16> to vector<32x9xbf16>
    %209 = tpu.concatenate %207, %208 in 1 : vector<32x119xbf16>, vector<32x9xbf16> -> vector<32x128xbf16>
    %210 = vector.broadcast %16 : vector<1x128xbf16> to vector<32x128xbf16>
    %211 = arith.mulf %209, %210 : vector<32x128xbf16>
    %212 = tpu.concatenate %176, %181, %186, %191, %171, %196, %201, %206, %211 in 0 : vector<32x128xbf16>, vector<32x128xbf16>, vector<32x128xbf16>, vector<32x128xbf16>, vector<32x128xbf16>, vector<32x128xbf16>, vector<32x128xbf16>, vector<32x128xbf16>, vector<32x128xbf16> -> vector<288x128xbf16>
    %c0_25 = arith.constant 0 : index
    %c0_26 = arith.constant 0 : index
    %213 = vector.load %arg10[%c0_25, %c0_26] : memref<32x288xbf16, #tpu.memory_space<vmem>>, vector<32x288xbf16>
    %cst_27 = arith.constant dense<0.000000e+00> : vector<32x128xf32>
    %214 = tpu.matmul %213, %212, %cst_27 {dimension_numbers = #tpu.dot_dimension_numbers<[1], [0], [0], [1], [0, 0, 1, 1], [], []>} : vector<32x288xbf16>, vector<288x128xbf16>, vector<32x128xf32> -> vector<32x128xf32>
    %c0_28 = arith.constant 0 : index
    %c0_29 = arith.constant 0 : index
    %215 = vector.load %arg11[%c0_28, %c0_29] : memref<32x1xf32, #tpu.memory_space<vmem>>, vector<32x1xf32>
    %216 = vector.broadcast %215 : vector<32x1xf32> to vector<32x128xf32>
    %217 = arith.addf %214, %216 : vector<32x128xf32>
    %218 = arith.addf %217, %121 : vector<32x128xf32>
    %cst_30 = arith.constant 0.000000e+00 : f32
    %219 = vector.broadcast %cst_30 : f32 to vector<32x128xf32>
    %220 = arith.maximumf %218, %219 : vector<32x128xf32>
    %221 = arith.truncf %220 : vector<32x128xf32> to vector<32x128xbf16>
    %c0_31 = arith.constant 0 : index
    %c0_32 = arith.constant 0 : index
    %222 = vector.load %arg12[%c0_31, %c0_32] : memref<4x32xbf16, #tpu.memory_space<vmem>>, vector<4x32xbf16>
    %cst_33 = arith.constant dense<0.000000e+00> : vector<4x128xf32>
    %223 = tpu.matmul %222, %221, %cst_33 {dimension_numbers = #tpu.dot_dimension_numbers<[1], [0], [0], [1], [0, 0, 1, 1], [], []>} : vector<4x32xbf16>, vector<32x128xbf16>, vector<4x128xf32> -> vector<4x128xf32>
    %c0_34 = arith.constant 0 : index
    %c0_35 = arith.constant 0 : index
    %224 = vector.load %arg13[%c0_34, %c0_35] : memref<4x1xf32, #tpu.memory_space<vmem>>, vector<4x1xf32>
    %225 = vector.broadcast %224 : vector<4x1xf32> to vector<4x128xf32>
    %226 = arith.addf %223, %225 : vector<4x128xf32>
    %cst_36 = arith.constant 0.000000e+00 : f32
    %227 = vector.broadcast %cst_36 : f32 to vector<4x128xf32>
    %228 = arith.maximumf %226, %227 : vector<4x128xf32>
    %c0_37 = arith.constant 0 : index
    %c0_38 = arith.constant 0 : index
    %229 = vector.load %arg16[%c0_37, %c0_38] : memref<2x32xbf16, #tpu.memory_space<vmem>>, vector<2x32xbf16>
    %cst_39 = arith.constant dense<0.000000e+00> : vector<2x128xf32>
    %230 = tpu.matmul %229, %221, %cst_39 {dimension_numbers = #tpu.dot_dimension_numbers<[1], [0], [0], [1], [0, 0, 1, 1], [], []>} : vector<2x32xbf16>, vector<32x128xbf16>, vector<2x128xf32> -> vector<2x128xf32>
    %c0_40 = arith.constant 0 : index
    %c0_41 = arith.constant 0 : index
    %231 = vector.load %arg17[%c0_40, %c0_41] : memref<2x1xf32, #tpu.memory_space<vmem>>, vector<2x1xf32>
    %232 = vector.broadcast %231 : vector<2x1xf32> to vector<2x128xf32>
    %233 = arith.addf %230, %232 : vector<2x128xf32>
    %cst_42 = arith.constant 0.000000e+00 : f32
    %234 = vector.broadcast %cst_42 : f32 to vector<2x128xf32>
    %235 = arith.maximumf %233, %234 : vector<2x128xf32>
    %236 = vector.extract_strided_slice %228 {offsets = [0, 0], sizes = [1, 64], strides = [1, 1]} : vector<4x128xf32> to vector<1x64xf32>
    %237 = vector.extract_strided_slice %228 {offsets = [1, 0], sizes = [1, 64], strides = [1, 1]} : vector<4x128xf32> to vector<1x64xf32>
    %238 = vector.extract_strided_slice %228 {offsets = [2, 0], sizes = [1, 64], strides = [1, 1]} : vector<4x128xf32> to vector<1x64xf32>
    %239 = vector.extract_strided_slice %228 {offsets = [3, 0], sizes = [1, 64], strides = [1, 1]} : vector<4x128xf32> to vector<1x64xf32>
    %240 = tpu.concatenate %236, %237, %238, %239 in 1 : vector<1x64xf32>, vector<1x64xf32>, vector<1x64xf32>, vector<1x64xf32> -> vector<1x256xf32>
    %241 = vector.extract_strided_slice %228 {offsets = [0, 64], sizes = [1, 64], strides = [1, 1]} : vector<4x128xf32> to vector<1x64xf32>
    %242 = vector.extract_strided_slice %228 {offsets = [1, 64], sizes = [1, 64], strides = [1, 1]} : vector<4x128xf32> to vector<1x64xf32>
    %243 = vector.extract_strided_slice %228 {offsets = [2, 64], sizes = [1, 64], strides = [1, 1]} : vector<4x128xf32> to vector<1x64xf32>
    %244 = vector.extract_strided_slice %228 {offsets = [3, 64], sizes = [1, 64], strides = [1, 1]} : vector<4x128xf32> to vector<1x64xf32>
    %245 = tpu.concatenate %241, %242, %243, %244 in 1 : vector<1x64xf32>, vector<1x64xf32>, vector<1x64xf32>, vector<1x64xf32> -> vector<1x256xf32>
    %246 = tpu.concatenate %240, %245 in 0 : vector<1x256xf32>, vector<1x256xf32> -> vector<2x256xf32>
    %247 = arith.truncf %246 : vector<2x256xf32> to vector<2x256xbf16>
    %248 = vector.extract_strided_slice %235 {offsets = [0, 0], sizes = [1, 64], strides = [1, 1]} : vector<2x128xf32> to vector<1x64xf32>
    %249 = vector.extract_strided_slice %235 {offsets = [1, 0], sizes = [1, 64], strides = [1, 1]} : vector<2x128xf32> to vector<1x64xf32>
    %250 = tpu.concatenate %248, %249 in 1 : vector<1x64xf32>, vector<1x64xf32> -> vector<1x128xf32>
    %251 = vector.extract_strided_slice %235 {offsets = [0, 64], sizes = [1, 64], strides = [1, 1]} : vector<2x128xf32> to vector<1x64xf32>
    %252 = vector.extract_strided_slice %235 {offsets = [1, 64], sizes = [1, 64], strides = [1, 1]} : vector<2x128xf32> to vector<1x64xf32>
    %253 = tpu.concatenate %251, %252 in 1 : vector<1x64xf32>, vector<1x64xf32> -> vector<1x128xf32>
    %254 = tpu.concatenate %250, %253 in 0 : vector<1x128xf32>, vector<1x128xf32> -> vector<2x128xf32>
    %255 = arith.truncf %254 : vector<2x128xf32> to vector<2x128xbf16>
    %c0_43 = arith.constant 0 : index
    %c0_44 = arith.constant 0 : index
    %256 = vector.load %arg14[%c0_43, %c0_44] : memref<256x64xbf16, #tpu.memory_space<vmem>>, vector<256x64xbf16>
    %cst_45 = arith.constant dense<0.000000e+00> : vector<2x64xf32>
    %257 = tpu.matmul %247, %256, %cst_45 {dimension_numbers = #tpu.dot_dimension_numbers<[1], [0], [0], [1], [0, 0, 1, 1], [], []>} : vector<2x256xbf16>, vector<256x64xbf16>, vector<2x64xf32> -> vector<2x64xf32>
    %c0_46 = arith.constant 0 : index
    %c0_47 = arith.constant 0 : index
    %258 = vector.load %arg15[%c0_46, %c0_47] : memref<1x64xf32, #tpu.memory_space<vmem>>, vector<1x64xf32>
    %259 = vector.broadcast %258 : vector<1x64xf32> to vector<2x64xf32>
    %260 = arith.addf %257, %259 : vector<2x64xf32>
    %c0_48 = arith.constant 0 : index
    %c0_49 = arith.constant 0 : index
    %261 = vector.load %arg22[%c0_48, %c0_49] : memref<2x64xf32, #tpu.memory_space<vmem>>, vector<2x64xf32>
    tpu.vector_store %arg22[%c0_48, %c0_49], %260 {strides = array<i32>} : memref<2x64xf32, #tpu.memory_space<vmem>>, vector<2x64xf32>,
    %c0_50 = arith.constant 0 : index
    %c0_51 = arith.constant 0 : index
    %262 = vector.load %arg18[%c0_50, %c0_51] : memref<128x256xbf16, #tpu.memory_space<vmem>>, vector<128x256xbf16>
    %cst_52 = arith.constant dense<0.000000e+00> : vector<2x256xf32>
    %263 = tpu.matmul %255, %262, %cst_52 {dimension_numbers = #tpu.dot_dimension_numbers<[1], [0], [0], [1], [0, 0, 1, 1], [], []>} : vector<2x128xbf16>, vector<128x256xbf16>, vector<2x256xf32> -> vector<2x256xf32>
    %c0_53 = arith.constant 0 : index
    %c0_54 = arith.constant 0 : index
    %264 = vector.load %arg19[%c0_53, %c0_54] : memref<1x256xf32, #tpu.memory_space<vmem>>, vector<1x256xf32>
    %265 = vector.broadcast %264 : vector<1x256xf32> to vector<2x256xf32>
    %266 = arith.addf %263, %265 : vector<2x256xf32>
    %cst_55 = arith.constant 0.000000e+00 : f32
    %267 = vector.broadcast %cst_55 : f32 to vector<2x256xf32>
    %268 = arith.maximumf %266, %267 : vector<2x256xf32>
    %269 = arith.truncf %268 : vector<2x256xf32> to vector<2x256xbf16>
    %c0_56 = arith.constant 0 : index
    %c0_57 = arith.constant 0 : index
    %270 = vector.load %arg20[%c0_56, %c0_57] : memref<256x1xbf16, #tpu.memory_space<vmem>>, vector<256x1xbf16>
    %cst_58 = arith.constant dense<0.000000e+00> : vector<2x1xf32>
    %271 = tpu.matmul %269, %270, %cst_58 {dimension_numbers = #tpu.dot_dimension_numbers<[1], [0], [0], [1], [0, 0, 1, 1], [], []>} : vector<2x256xbf16>, vector<256x1xbf16>, vector<2x1xf32> -> vector<2x1xf32>
    %c0_59 = arith.constant 0 : index
    %c0_60 = arith.constant 0 : index
    %272 = vector.load %arg21[%c0_59, %c0_60] : memref<1x1xf32, #tpu.memory_space<vmem>>, vector<1x1xf32>
    %273 = vector.broadcast %272 : vector<1x1xf32> to vector<2x1xf32>
    %274 = arith.addf %271, %273 : vector<2x1xf32>
    %275 = math.tanh %274 : vector<2x1xf32>
    %c0_61 = arith.constant 0 : index
    %c0_62 = arith.constant 0 : index
    %276 = vector.load %arg23[%c0_61, %c0_62] : memref<2x1xf32, #tpu.memory_space<vmem>>, vector<2x1xf32>
    tpu.vector_store %arg23[%c0_61, %c0_62], %275 {strides = array<i32>} : memref<2x1xf32, #tpu.memory_space<vmem>>, vector<2x1xf32>,
    return
  }
}

</mosaic_0001>

<llo_original>
// kernel: az_forward.1
$region0: #{az_forward.1}
  #allocation0 [shape = 'u32[]', space=smem, size = 0x4, offset = 0x4, fixed_abs, tag = 'smem constant byte address 0x4 - core index']
  #allocation1 [shape = 'u32[144,128]{1,0:T(1,128)}', space=vmem, size = 0x12000, scoped, tag = 'internal scratch']
  #allocation2 [shape = 'f32[1,1]{1,0:T(1,128)S(1)}', space=vmem, size = 0x200, scoped, tag = 'scoped memory for az_forward.1']
  %s0 = inlined_call_operand.vmem [shape: f32[5,128], index: 0, kind: input, shape index: {}]
  %s1 = inlined_call_operand.vmem [shape: f32[9,128], index: 1, kind: input, shape index: {}]
  %s2 = inlined_call_operand.vmem [shape: bf16[32,45], index: 2, kind: input, shape index: {}]
  %s3 = inlined_call_operand.vmem [shape: f32[32,1], index: 3, kind: input, shape index: {}]
  %s4 = inlined_call_operand.vmem [shape: bf16[32,288], index: 4, kind: input, shape index: {}]
  %s5 = inlined_call_operand.vmem [shape: f32[32,1], index: 5, kind: input, shape index: {}]
  %s6 = inlined_call_operand.vmem [shape: bf16[32,5], index: 6, kind: input, shape index: {}]
  %s7 = inlined_call_operand.vmem [shape: f32[32,1], index: 7, kind: input, shape index: {}]
  %s8 = inlined_call_operand.vmem [shape: bf16[32,288], index: 8, kind: input, shape index: {}]
  %s9 = inlined_call_operand.vmem [shape: f32[32,1], index: 9, kind: input, shape index: {}]
  %s10 = inlined_call_operand.vmem [shape: bf16[32,288], index: 10, kind: input, shape index: {}]
  %s11 = inlined_call_operand.vmem [shape: f32[32,1], index: 11, kind: input, shape index: {}]
  %s12 = inlined_call_operand.vmem [shape: bf16[4,32], index: 12, kind: input, shape index: {}]
  %s13 = inlined_call_operand.vmem [shape: f32[4,1], index: 13, kind: input, shape index: {}]
  %s14 = inlined_call_operand.vmem [shape: bf16[256,64], index: 14, kind: input, shape index: {}]
  %s15 = inlined_call_operand.vmem [shape: f32[1,64], index: 15, kind: input, shape index: {}]
  %s16 = inlined_call_operand.vmem [shape: bf16[2,32], index: 16, kind: input, shape index: {}]
  %s17 = inlined_call_operand.vmem [shape: f32[2,1], index: 17, kind: input, shape index: {}]
  %s18 = inlined_call_operand.vmem [shape: bf16[128,256], index: 18, kind: input, shape index: {}]
  %s19 = inlined_call_operand.vmem [shape: f32[1,256], index: 19, kind: input, shape index: {}]
  %s20 = inlined_call_operand.vmem [shape: bf16[256,1], index: 20, kind: input, shape index: {}]
  %s21 = inlined_call_operand.<no memory space> [shape: f32[1,1], index: 21, kind: input, shape index: {}]
  %s22 = inlined_call_operand.hbm [shape: f32[2,64], index: 22, kind: output, shape index: {0}]
  %s23 = inlined_call_operand.vmem [shape: f32[2,1], index: 23, kind: output, shape index: {1}]
  %24 = xla_tuple %s22, %s23
  %s25 = sld [smem:[#allocation0]]
  $region106: #{az_forward.1} parent=0
    _
  %s27 = ssub.s32 1, %s25
  %s28 = scalar_select 0, %s27, %s25
  %v29 = vstv %s21
  %30 = vst [vmem:[#allocation2] sm:$0x1] %v29
  $region1: #{az_forward.1} parent=0
    #allocation3 [shape = 'u8[1024]{0}', space=vmem, size = 0x400, scoped, tag = 'output window, operand 0, single buffered']
    #allocation4 [shape = 's32[1]{0}', space=sflag, size = 0x4, scoped, tag = 'scoped memory for az_forward.1']
    %31 = vsyncpa [#allocation4], 0
    // Predicated region
    $region2: #{az_forward.1} parent=1 // pred_check
      _
    $region3: #{az_forward.1} parent=1 // pred_check_branch
      %33 = sbr.rel (0) target = $region5
    $region4: #{az_forward.1} parent=1 // pred_region
      _
    $region5: #{az_forward.1} parent=1 // pred_fallthru
      _
    // Predicated region
    $region6: #{az_forward.1} parent=1 // pred_check
      _
    $region7: #{az_forward.1} parent=1 // pred_check_branch
      %35 = sbr.rel (0) target = $region9
    $region8: #{az_forward.1} parent=1 // pred_region
      _
    $region9: #{az_forward.1} parent=1 // pred_fallthru
      _
    // Predicated region
    $region10: #{az_forward.1} parent=1 // pred_check
      _
    $region11: #{az_forward.1} parent=1 // pred_check_branch
      %37 = sbr.rel (0) target = $region13
    $region12: #{az_forward.1} parent=1 // pred_region
      _
    $region13: #{az_forward.1} parent=1 // pred_fallthru
      _
    // Predicated region
    $region14: #{az_forward.1} parent=1 // pred_check
      _
    $region15: #{az_forward.1} parent=1 // pred_check_branch
      %39 = sbr.rel (0) target = $region17
    $region16: #{az_forward.1} parent=1 // pred_region
      _
    $region17: #{az_forward.1} parent=1 // pred_fallthru
      _
    // Predicated region
    $region18: #{az_forward.1} parent=1 // pred_check
      _
    $region19: #{az_forward.1} parent=1 // pred_check_branch
      %41 = sbr.rel (0) target = $region21
    $region20: #{az_forward.1} parent=1 // pred_region
      _
    $region21: #{az_forward.1} parent=1 // pred_fallthru
      _
    // Predicated region
    $region22: #{az_forward.1} parent=1 // pred_check
      _
    $region23: #{az_forward.1} parent=1 // pred_check_branch
      %43 = sbr.rel (0) target = $region25
    $region24: #{az_forward.1} parent=1 // pred_region
      _
    $region25: #{az_forward.1} parent=1 // pred_fallthru
      _
    // Predicated region
    $region26: #{az_forward.1} parent=1 // pred_check
      _
    $region27: #{az_forward.1} parent=1 // pred_check_branch
      %45 = sbr.rel (0) target = $region29
    $region28: #{az_forward.1} parent=1 // pred_region
      _
    $region29: #{az_forward.1} parent=1 // pred_fallthru
      _
    // Predicated region
    $region30: #{az_forward.1} parent=1 // pred_check
      _
    $region31: #{az_forward.1} parent=1 // pred_check_branch
      %47 = sbr.rel (0) target = $region33
    $region32: #{az_forward.1} parent=1 // pred_region
      _
    $region33: #{az_forward.1} parent=1 // pred_fallthru
      _
    // Predicated region
    $region34: #{az_forward.1} parent=1 // pred_check
      _
    $region35: #{az_forward.1} parent=1 // pred_check_branch
      %49 = sbr.rel (0) target = $region37
    $region36: #{az_forward.1} parent=1 // pred_region
      _
    $region37: #{az_forward.1} parent=1 // pred_fallthru
      _
    // Predicated region
    $region38: #{az_forward.1} parent=1 // pred_check
      _
    $region39: #{az_forward.1} parent=1 // pred_check_branch
      %51 = sbr.rel (0) target = $region41
    $region40: #{az_forward.1} parent=1 // pred_region
      _
    $region41: #{az_forward.1} parent=1 // pred_fallthru
      _
    // Predicated region
    $region42: #{az_forward.1} parent=1 // pred_check
      _
    $region43: #{az_forward.1} parent=1 // pred_check_branch
      %53 = sbr.rel (0) target = $region45
    $region44: #{az_forward.1} parent=1 // pred_region
      _
    $region45: #{az_forward.1} parent=1 // pred_fallthru
      _
    // Predicated region
    $region46: #{az_forward.1} parent=1 // pred_check
      _
    $region47: #{az_forward.1} parent=1 // pred_check_branch
      %55 = sbr.rel (0) target = $region49
    $region48: #{az_forward.1} parent=1 // pred_region
      _
    $region49: #{az_forward.1} parent=1 // pred_fallthru
      _
    // Predicated region
    $region50: #{az_forward.1} parent=1 // pred_check
      _
    $region51: #{az_forward.1} parent=1 // pred_check_branch
      %57 = sbr.rel (0) target = $region53
    $region52: #{az_forward.1} parent=1 // pred_region
      _
    $region53: #{az_forward.1} parent=1 // pred_fallthru
      _
    // Predicated region
    $region54: #{az_forward.1} parent=1 // pred_check
      _
    $region55: #{az_forward.1} parent=1 // pred_check_branch
      %59 = sbr.rel (0) target = $region57
    $region56: #{az_forward.1} parent=1 // pred_region
      _
    $region57: #{az_forward.1} parent=1 // pred_fallthru
      _
    // Predicated region
    $region58: #{az_forward.1} parent=1 // pred_check
      _
    $region59: #{az_forward.1} parent=1 // pred_check_branch
      %61 = sbr.rel (0) target = $region61
    $region60: #{az_forward.1} parent=1 // pred_region
      _
    $region61: #{az_forward.1} parent=1 // pred_fallthru
      _
    // Predicated region
    $region62: #{az_forward.1} parent=1 // pred_check
      _
    $region63: #{az_forward.1} parent=1 // pred_check_branch
      %63 = sbr.rel (0) target = $region65
    $region64: #{az_forward.1} parent=1 // pred_region
      _
    $region65: #{az_forward.1} parent=1 // pred_fallthru
      _
    // Predicated region
    $region66: #{az_forward.1} parent=1 // pred_check
      _
    $region67: #{az_forward.1} parent=1 // pred_check_branch
      %65 = sbr.rel (0) target = $region69
    $region68: #{az_forward.1} parent=1 // pred_region
      _
    $region69: #{az_forward.1} parent=1 // pred_fallthru
      _
    // Predicated region
    $region70: #{az_forward.1} parent=1 // pred_check
      _
    $region71: #{az_forward.1} parent=1 // pred_check_branch
      %67 = sbr.rel (0) target = $region73
    $region72: #{az_forward.1} parent=1 // pred_region
      _
    $region73: #{az_forward.1} parent=1 // pred_fallthru
      _
    // Predicated region
    $region74: #{az_forward.1} parent=1 // pred_check
      _
    $region75: #{az_forward.1} parent=1 // pred_check_branch
      %69 = sbr.rel (0) target = $region77
    $region76: #{az_forward.1} parent=1 // pred_region
      _
    $region77: #{az_forward.1} parent=1 // pred_fallthru
      _
    // Predicated region
    $region78: #{az_forward.1} parent=1 // pred_check
      _
    $region79: #{az_forward.1} parent=1 // pred_check_branch
      %71 = sbr.rel (0) target = $region81
    $region80: #{az_forward.1} parent=1 // pred_region
      _
    $region81: #{az_forward.1} parent=1 // pred_fallthru
      _
    // Predicated region
    $region82: #{az_forward.1} parent=1 // pred_check
      _
    $region83: #{az_forward.1} parent=1 // pred_check_branch
      %73 = sbr.rel (0) target = $region85
    $region84: #{az_forward.1} parent=1 // pred_region
      _
    $region85: #{az_forward.1} parent=1 // pred_fallthru
      _
    // Predicated region
    $region86: #{az_forward.1} parent=1 // pred_check
      _
    $region87: #{az_forward.1} parent=1 // pred_check_branch
      %75 = sbr.rel (0) target = $region89
    $region88: #{az_forward.1} parent=1 // pred_region
      _
    $region89: #{az_forward.1} parent=1 // pred_fallthru
      _
    %v77 = vld [vmem:[%s1] sm:$0xff]
    %v78 = vld [vmem:[%s1 + $0x8] sm:$0x1]
    %v79 = vpack.c.bf16 %v77, %v77
    %v80 = vpack.c.bf16 %v78, %v78
    %v81 = vld [vmem:[%s0] sm:$0x1f]
    %v82 = vpack.c.bf16 %v81, %v81
    %84 = vrot.lane.b32.xlu0 %v82, 9
    %v85 = vpop.permute.xlu0 %84
    %v89 = vpack.i.b16 %v79, %v79
    %v91 = vlaneseq
    %v92 = vshrl.u32 %v91, 7
    %v93 = vsub.s32 0, %v92
    %v94 = vrot.slane %v89, %v93
    %v95 = vmul.bf16 %v85, %v94
    %96 = vrot.lane.b32.xlu0 %v82, 8
    %v97 = vpop.permute.xlu0 %96
    %v100 = vshrl.u32 %v79, 16
    %v101 = vpack.i.b16 %v100, %v100
    %v103 = vlaneseq
    %v104 = vshrl.u32 %v103, 7
    %v105 = vsub.s32 0, %v104
    %v106 = vrot.slane %v101, %v105
    %v107 = vmul.bf16 %v97, %v106
    %108 = vrot.lane.b32.xlu0 %v82, 7
    %v109 = vpop.permute.xlu0 %108
    %v112 = vlaneseq
    %v113 = vshrl.u32 %v112, 7
    %v114 = vsub.s32 1, %v113
    %v115 = vrot.slane %v89, %v114
    %v116 = vmul.bf16 %v109, %v115
    %117 = vrot.lane.b32.xlu0 %v82, 1
    %v118 = vpop.permute.xlu0 %117
    %v121 = vlaneseq
    %v122 = vshrl.u32 %v121, 7
    %v123 = vsub.s32 1, %v122
    %v124 = vrot.slane %v101, %v123
    %v125 = vmul.bf16 %v118, %v124
    %126 = vrot.lane.b32.xlu0 %v82, 127
    %v127 = vpop.permute.xlu0 %126
    %v130 = vlaneseq
    %v131 = vshrl.u32 %v130, 7
    %v132 = vsub.s32 2, %v131
    %v133 = vrot.slane %v101, %v132
    %v134 = vmul.bf16 %v127, %v133
    %135 = vrot.lane.b32.xlu0 %v82, 121
    %v136 = vpop.permute.xlu0 %135
    %v139 = vlaneseq
    %v140 = vshrl.u32 %v139, 7
    %v141 = vsub.s32 3, %v140
    %v142 = vrot.slane %v89, %v141
    %v143 = vmul.bf16 %v136, %v142
    %144 = vrot.lane.b32.xlu0 %v82, 120
    %v145 = vpop.permute.xlu0 %144
    %v148 = vlaneseq
    %v149 = vshrl.u32 %v148, 7
    %v150 = vsub.s32 3, %v149
    %v151 = vrot.slane %v101, %v150
    %v152 = vmul.bf16 %v145, %v151
    %153 = vrot.lane.b32.xlu0 %v82, 119
    %v154 = vpop.permute.xlu0 %153
    %v158 = vpack.i.b16 %v80, %v80
    %v160 = vlaneseq
    %v161 = vshrl.u32 %v160, 7
    %v162 = vsub.s32 0, %v161
    %v163 = vrot.slane %v158, %v162
    %v164 = vmul.bf16 %v154, %v163
    %v166 = vshrl.u32 %v107, 16
    %v168 = vrot.slane %v166, 5
    %v169 = vshll.u32 %v107, 16
    %v171 = vrot.slane %v169, 6
    %v172 = vor.u32 %v168, %v171
    %v175 = vrot.slane %v116, 3
    %v177 = vshll.u32 %v125, 16
    %v179 = vrot.slane %v177, 1
    %v180 = vshrl.u32 %v125, 16
    %v182 = vor.u32 %v180, %v179
    %v184 = vrot.slane %v82, 6
    %v186 = vshrl.u32 %v134, 16
    %v188 = vrot.slane %v186, 3
    %v189 = vshll.u32 %v134, 16
    %v191 = vrot.slane %v189, 4
    %v192 = vor.u32 %v188, %v191
    %v195 = vrot.slane %v143, 1
    %v198 = vshrl.u32 %v152, 16
    %v200 = vrot.slane %v198, 6
    %v201 = vshll.u32 %v152, 16
    %v203 = vrot.slane %v201, 7
    %v204 = vor.u32 %v200, %v203
    %v207 = vrot.slane %v164, 4
    %vm208 = vcmask 1042432
    %vm209 = vsmask.f32 2304
    %vm210 = vmand %vm208, %vm209
    %v211 = vsel %vm210, %v95, %v172
    %vm212 = vcmask 1044480
    %v215 = vsel %vm212, %v211, %v175
    %vm217 = vcmask 1047552
    %vm218 = vsmask.f32 7424
    %vm219 = vmand %vm217, %vm218
    %v220 = vsel %vm219, %v215, %v179
    %vm221 = vcmask 1041408
    %v224 = vsel %vm221, %v182, %v184
    %vm226 = vcmask 1044480
    %vm227 = vsmask.f32 4352
    %vm228 = vmand %vm226, %vm227
    %v229 = vsel %vm228, %v224, %v192
    %vm230 = vcmask 1046528
    %v233 = vsel %vm230, %v229, %v195
    %vm235 = vcmask 1041408
    %vm236 = vsmask.f32 1280
    %vm237 = vmand %vm235, %vm236
    %v238 = vsel %vm237, %v195, %v204
    %vm239 = vcmask 1043456
    %v242 = vsel %vm239, %v238, %v207
    %v243 = vld [vmem:[%s2] sm:$0xf]
    %v244 = vld [vmem:[%s2 + $0x4] sm:$0xf]
    %v245 = vld [vmem:[%s2 + $0x8] sm:$0xf]
    %v246 = vld [vmem:[%s2 + $0xc] sm:$0xf]
    %v247 = vld [vmem:[%s3] sm:$0xff]
    %v248 = vld [vmem:[%s3 + $0x8] sm:$0xff]
    %v249 = vld [vmem:[%s3 + $0x10] sm:$0xff]
    %v250 = vld [vmem:[%s3 + $0x18] sm:$0xff]
    %252 = vset.pattern.permute.xlu0 0
    %253 = vperm.xlu0 %252, %v247
    %v254 = vpop.permute.xlu0 %253
    %257 = vset.pattern.permute.xlu0 0
    %258 = vperm.xlu0 %257, %v248
    %v259 = vpop.permute.xlu0 %258
    %262 = vset.pattern.permute.xlu0 0
    %263 = vperm.xlu0 %262, %v249
    %v264 = vpop.permute.xlu0 %263
    %267 = vset.pattern.permute.xlu0 0
    %268 = vperm.xlu0 %267, %v250
    %v269 = vpop.permute.xlu0 %268
    %v275 = vunpack.c.l.b16 %v243
    %v276 = vunpack.c.l.b16 %v244
    %v277 = vunpack.c.l.b16 %v245
    %v278 = vunpack.c.l.b16 %v246
    %v279 = vpack.c.b16 %v276, %v275
    %v280 = vpack.c.b16 %v278, %v277
    %vm281 = vcmask 367616
    %v283 = vsel %vm281, %v279, 0
    %v286 = vsel %vm281, %v280, 0
    %vm288 = vcmask 1045504
    %v289 = vsel %vm288, 4294967295, 65535
    %v290 = vsel %vm230, %v289, 0
    %v291 = vand.u32 %v242, %v290
    %293 = vmatprep.subr.bf16.mxu0 0
    %294 = vmatpush1.bf16.msra.mxu0 0
    %295 = vmatprep.subr.bf16.mxu0 0
    %296 = vmatpush1.bf16.msra.mxu0 0
    %297 = vmatprep.subr.bf16.mxu0 0
    %298 = vmatpush1.bf16.msra.mxu0 0
    %299 = vmatprep.subr.bf16.mxu0 0
    %300 = vmatpush1.bf16.msra.mxu0 0
    %301 = vmatprep.subr.bf16.mxu0 0
    %302 = vmatpush1.bf16.msra.mxu0 0
    %303 = vmatprep.subr.bf16.mxu0 0
    %304 = vmatpush1.bf16.msra.mxu0 %v291
    %305 = vmatprep.subr.bf16.mxu0 0
    %306 = vmatpush1.bf16.msra.mxu0 %v233
    %307 = vmatprep.subr.bf16.mxu0 0
    %308 = vmatpush1.bf16.msra.mxu0 %v220
    %309 = vmatprep.subr.bf16.mxu0 0
    %310 = vmatpush2.bf16.msra.mxu0 0
    %311 = vmatprep.subr.bf16.mxu0 0
    %312 = vmatpush2.bf16.msra.mxu0 0
    %313 = vmatprep.subr.bf16.mxu0 0
    %314 = vmatpush2.bf16.msra.mxu0 0
    %315 = vmatprep.subr.bf16.mxu0 0
    %316 = vmatpush2.bf16.msra.mxu0 0
    %317 = vmatprep.subr.bf16.mxu0 0
    %318 = vmatpush2.bf16.msra.mxu0 0
    %319 = vmatprep.subr.bf16.mxu0 0
    %320 = vmatpush2.bf16.msra.mxu0 0
    %321 = vmatprep.subr.bf16.mxu0 0
    %322 = vmatpush2.bf16.msra.mxu0 0
    %323 = vmatprep.subr.bf16.mxu0 0
    %324 = vmatpush2.bf16.msra.mxu0 0
    %325 = vmatprep.mubr.bf16.mxu0 0
    %326 = vmatmul.mubr.bf16.gmra.mxu0 %v283
    %v327 = vpop.f32.mrf.mxu0
    %v328 = vadd.f32 %v254, %v327
    %v329 = vpop.f32.mrf.mxu0
    %v330 = vpop.f32.mrf.mxu0
    %v331 = vadd.f32 %v259, %v330
    %v332 = vpop.f32.mrf.mxu0
    %333 = vmatprep.mubr.bf16.mxu0 0
    %334 = vmatmul.mubr.bf16.gmra.mxu0 %v286
    %v335 = vpop.f32.mrf.mxu0
    %v336 = vadd.f32 %v264, %v335
    %v337 = vpop.f32.mrf.mxu0
    %v338 = vpop.f32.mrf.mxu0
    %v339 = vadd.f32 %v269, %v338
    %v340 = vpop.f32.mrf.mxu0
    %341 = vdwg.mxu0
    %v342 = vmax.f32 %v328, 0.0
    %v343 = vmax.f32 %v331, 0.0
    %v344 = vmax.f32 %v336, 0.0
    %v345 = vmax.f32 %v339, 0.0
    %v346 = vpack.c.bf16 %v343, %v342
    %v347 = vpack.c.bf16 %v345, %v344
    %350 = vrot.lane.b32.xlu0 %v346, 9
    %v351 = vpop.permute.xlu0 %350
    %352 = vrot.lane.b32.xlu0 %v347, 9
    %v353 = vpop.permute.xlu0 %352
    %v358 = vmul.bf16 %v351, %v94
    %v359 = vmul.bf16 %v353, %v94
    %360 = vrot.lane.b32.xlu0 %v346, 8
    %v361 = vpop.permute.xlu0 %360
    %362 = vrot.lane.b32.xlu0 %v347, 8
    %v363 = vpop.permute.xlu0 %362
    %v368 = vmul.bf16 %v361, %v106
    %v369 = vmul.bf16 %v363, %v106
    %370 = vrot.lane.b32.xlu0 %v346, 7
    %v371 = vpop.permute.xlu0 %370
    %372 = vrot.lane.b32.xlu0 %v347, 7
    %v373 = vpop.permute.xlu0 %372
    %v378 = vmul.bf16 %v371, %v115
    %v379 = vmul.bf16 %v373, %v115
    %380 = vrot.lane.b32.xlu0 %v346, 1
    %v381 = vpop.permute.xlu0 %380
    %382 = vrot.lane.b32.xlu0 %v347, 1
    %v383 = vpop.permute.xlu0 %382
    %v388 = vmul.bf16 %v381, %v124
    %v389 = vmul.bf16 %v383, %v124
    %390 = vrot.lane.b32.xlu0 %v346, 127
    %v391 = vpop.permute.xlu0 %390
    %392 = vrot.lane.b32.xlu0 %v347, 127
    %v393 = vpop.permute.xlu0 %392
    %v398 = vmul.bf16 %v391, %v133
    %v399 = vmul.bf16 %v393, %v133
    %400 = vrot.lane.b32.xlu0 %v346, 121
    %v401 = vpop.permute.xlu0 %400
    %402 = vrot.lane.b32.xlu0 %v347, 121
    %v403 = vpop.permute.xlu0 %402
    %v408 = vmul.bf16 %v401, %v142
    %v409 = vmul.bf16 %v403, %v142
    %410 = vrot.lane.b32.xlu0 %v346, 120
    %v411 = vpop.permute.xlu0 %410
    %412 = vrot.lane.b32.xlu0 %v347, 120
    %v413 = vpop.permute.xlu0 %412
    %v418 = vmul.bf16 %v411, %v151
    %v419 = vmul.bf16 %v413, %v151
    %420 = vrot.lane.b32.xlu0 %v346, 119
    %v421 = vpop.permute.xlu0 %420
    %422 = vrot.lane.b32.xlu0 %v347, 119
    %v423 = vpop.permute.xlu0 %422
    %v428 = vmul.bf16 %v421, %v163
    %v429 = vmul.bf16 %v423, %v163
    %v430 = vld [vmem:[%s4] sm:$0xff]
    %v431 = vld [vmem:[%s4 + $0x8] sm:$0xf]
    %v432 = vld [vmem:[%s4 + $0xc] sm:$0xff]
    %v433 = vld [vmem:[%s4 + $0x14] sm:$0xf]
    %v434 = vld [vmem:[%s4 + $0x18] sm:$0xff]
    %v435 = vld [vmem:[%s4 + $0x20] sm:$0xf]
    %v436 = vld [vmem:[%s4 + $0x24] sm:$0xff]
    %v437 = vld [vmem:[%s4 + $0x2c] sm:$0xf]
    %v438 = vld [vmem:[%s5] sm:$0xff]
    %v439 = vld [vmem:[%s5 + $0x8] sm:$0xff]
    %v440 = vld [vmem:[%s5 + $0x10] sm:$0xff]
    %v441 = vld [vmem:[%s5 + $0x18] sm:$0xff]
    %443 = vset.pattern.permute.xlu0 0
    %444 = vperm.xlu0 %443, %v438
    %v445 = vpop.permute.xlu0 %444
    %448 = vset.pattern.permute.xlu0 0
    %449 = vperm.xlu0 %448, %v439
    %v450 = vpop.permute.xlu0 %449
    %453 = vset.pattern.permute.xlu0 0
    %454 = vperm.xlu0 %453, %v440
    %v455 = vpop.permute.xlu0 %454
    %458 = vset.pattern.permute.xlu0 0
    %459 = vperm.xlu0 %458, %v441
    %v460 = vpop.permute.xlu0 %459
    %v470 = vunpack.c.l.b16 %v430
    %v471 = vunpack.c.h.b16 %v430
    %v472 = vunpack.c.l.b16 %v431
    %v473 = vunpack.c.l.b16 %v432
    %v474 = vunpack.c.h.b16 %v432
    %v475 = vunpack.c.l.b16 %v433
    %v476 = vunpack.c.l.b16 %v434
    %v477 = vunpack.c.h.b16 %v434
    %v478 = vunpack.c.l.b16 %v435
    %v479 = vunpack.c.l.b16 %v436
    %v480 = vunpack.c.h.b16 %v436
    %v481 = vunpack.c.l.b16 %v437
    %v482 = vpack.c.b16 %v473, %v470
    %v483 = vpack.c.b16 %v474, %v471
    %v484 = vpack.c.b16 %v475, %v472
    %v485 = vpack.c.b16 %v479, %v476
    %v486 = vpack.c.b16 %v480, %v477
    %v487 = vpack.c.b16 %v481, %v478
    %vm492 = vcmask 261120
    %v494 = vsel %vm492, %v484, 0
    %v497 = vsel %vm492, %v487, 0
    %499 = vmatprep.subr.bf16.mxu0 0
    %500 = vmatpush1.bf16.msra.mxu0 %v389
    %501 = vmatprep.subr.bf16.mxu0 0
    %502 = vmatpush1.bf16.msra.mxu0 %v388
    %503 = vmatprep.subr.bf16.mxu0 0
    %504 = vmatpush1.bf16.msra.mxu0 %v379
    %505 = vmatprep.subr.bf16.mxu0 0
    %506 = vmatpush1.bf16.msra.mxu0 %v378
    %507 = vmatprep.subr.bf16.mxu0 0
    %508 = vmatpush1.bf16.msra.mxu0 %v369
    %509 = vmatprep.subr.bf16.mxu0 0
    %510 = vmatpush1.bf16.msra.mxu0 %v368
    %511 = vmatprep.subr.bf16.mxu0 0
    %512 = vmatpush1.bf16.msra.mxu0 %v359
    %513 = vmatprep.subr.bf16.mxu0 0
    %514 = vmatpush1.bf16.msra.mxu0 %v358
    %515 = vmatprep.subr.bf16.mxu0 0
    %516 = vmatpush2.bf16.msra.mxu0 %v419
    %517 = vmatprep.subr.bf16.mxu0 0
    %518 = vmatpush2.bf16.msra.mxu0 %v418
    %519 = vmatprep.subr.bf16.mxu0 0
    %520 = vmatpush2.bf16.msra.mxu0 %v409
    %521 = vmatprep.subr.bf16.mxu0 0
    %522 = vmatpush2.bf16.msra.mxu0 %v408
    %523 = vmatprep.subr.bf16.mxu0 0
    %524 = vmatpush2.bf16.msra.mxu0 %v399
    %525 = vmatprep.subr.bf16.mxu0 0
    %526 = vmatpush2.bf16.msra.mxu0 %v398
    %527 = vmatprep.subr.bf16.mxu0 0
    %528 = vmatpush2.bf16.msra.mxu0 %v347
    %529 = vmatprep.subr.bf16.mxu0 0
    %530 = vmatpush2.bf16.msra.mxu0 %v346
    %531 = vmatprep.mubr.bf16.mxu0 %v483
    %532 = vmatmul.mubr.bf16.gmra.mxu0 %v482
    %v533 = vpop.f32.mrf.mxu0
    %v534 = vadd.f32 %v445, %v533
    %v535 = vpop.f32.mrf.mxu0
    %v536 = vpop.f32.mrf.mxu0
    %v537 = vadd.f32 %v450, %v536
    %v538 = vpop.f32.mrf.mxu0
    %539 = vmatprep.mubr.bf16.mxu0 %v486
    %540 = vmatmul.mubr.bf16.gmra.mxu0 %v485
    %v541 = vpop.f32.mrf.mxu0
    %v542 = vadd.f32 %v455, %v541
    %v543 = vpop.f32.mrf.mxu0
    %v544 = vpop.f32.mrf.mxu0
    %v545 = vadd.f32 %v460, %v544
    %v546 = vpop.f32.mrf.mxu0
    %547 = vdwg.mxu0
    %548 = vmatprep.subr.bf16.mxu0 0
    %549 = vmatpush1.bf16.msra.mxu0 0
    %550 = vmatprep.subr.bf16.mxu0 0
    %551 = vmatpush1.bf16.msra.mxu0 0
    %552 = vmatprep.subr.bf16.mxu0 0
    %553 = vmatpush1.bf16.msra.mxu0 0
    %554 = vmatprep.subr.bf16.mxu0 0
    %555 = vmatpush1.bf16.msra.mxu0 0
    %556 = vmatprep.subr.bf16.mxu0 0
    %557 = vmatpush1.bf16.msra.mxu0 0
    %558 = vmatprep.subr.bf16.mxu0 0
    %559 = vmatpush1.bf16.msra.mxu0 0
    %560 = vmatprep.subr.bf16.mxu0 0
    %561 = vmatpush1.bf16.msra.mxu0 %v429
    %562 = vmatprep.subr.bf16.mxu0 0
    %563 = vmatpush1.bf16.msra.mxu0 %v428
    %564 = vmatprep.subr.bf16.mxu0 0
    %565 = vmatpush2.bf16.msra.mxu0 0
    %566 = vmatprep.subr.bf16.mxu0 0
    %567 = vmatpush2.bf16.msra.mxu0 0
    %568 = vmatprep.subr.bf16.mxu0 0
    %569 = vmatpush2.bf16.msra.mxu0 0
    %570 = vmatprep.subr.bf16.mxu0 0
    %571 = vmatpush2.bf16.msra.mxu0 0
    %572 = vmatprep.subr.bf16.mxu0 0
    %573 = vmatpush2.bf16.msra.mxu0 0
    %574 = vmatprep.subr.bf16.mxu0 0
    %575 = vmatpush2.bf16.msra.mxu0 0
    %576 = vmatprep.subr.bf16.mxu0 0
    %577 = vmatpush2.bf16.msra.mxu0 0
    %578 = vmatprep.subr.bf16.mxu0 0
    %579 = vmatpush2.bf16.msra.mxu0 0
    %580 = vmatprep.mubr.bf16.mxu0 0
    %581 = vmatmul.mubr.bf16.gmra.mxu0 %v494
    %v582 = vpop.f32.mrf.mxu0
    %v583 = vadd.f32 %v534, %v582
    %v584 = vpop.f32.mrf.mxu0
    %v585 = vpop.f32.mrf.mxu0
    %v586 = vadd.f32 %v537, %v585
    %v587 = vpop.f32.mrf.mxu0
    %588 = vmatprep.mubr.bf16.mxu0 0
    %589 = vmatmul.mubr.bf16.gmra.mxu0 %v497
    %v590 = vpop.f32.mrf.mxu0
    %v591 = vadd.f32 %v542, %v590
    %v592 = vpop.f32.mrf.mxu0
    %v593 = vpop.f32.mrf.mxu0
    %v594 = vadd.f32 %v545, %v593
    %v595 = vpop.f32.mrf.mxu0
    %596 = vdwg.mxu0
    %v597 = vld [vmem:[%s6] sm:$0xf]
    %v598 = vld [vmem:[%s6 + $0x4] sm:$0xf]
    %v599 = vld [vmem:[%s6 + $0x8] sm:$0xf]
    %v600 = vld [vmem:[%s6 + $0xc] sm:$0xf]
    %v601 = vld [vmem:[%s7] sm:$0xff]
    %v602 = vld [vmem:[%s7 + $0x8] sm:$0xff]
    %v603 = vld [vmem:[%s7 + $0x10] sm:$0xff]
    %v604 = vld [vmem:[%s7 + $0x18] sm:$0xff]
    %606 = vset.pattern.permute.xlu0 0
    %607 = vperm.xlu0 %606, %v601
    %v608 = vpop.permute.xlu0 %607
    %611 = vset.pattern.permute.xlu0 0
    %612 = vperm.xlu0 %611, %v602
    %v613 = vpop.permute.xlu0 %612
    %616 = vset.pattern.permute.xlu0 0
    %617 = vperm.xlu0 %616, %v603
    %v618 = vpop.permute.xlu0 %617
    %621 = vset.pattern.permute.xlu0 0
    %622 = vperm.xlu0 %621, %v604
    %v623 = vpop.permute.xlu0 %622
    %v629 = vunpack.c.l.b16 %v597
    %v630 = vunpack.c.l.b16 %v598
    %v631 = vunpack.c.l.b16 %v599
    %v632 = vunpack.c.l.b16 %v600
    %v633 = vpack.c.b16 %v630, %v629
    %v634 = vpack.c.b16 %v632, %v631
    %vm635 = vcmask 39936
    %v637 = vsel %vm635, %v633, 0
    %v640 = vsel %vm635, %v634, 0
    %vm642 = vcmask 1042432
    %v643 = vsel %vm221, 4294967295, 65535
    %v644 = vsel %vm642, %v643, 0
    %v646 = vand.u32 %v82, %v644
    %648 = vmatprep.subr.bf16.mxu0 0
    %649 = vmatpush1.bf16.msra.mxu0 0
    %650 = vmatprep.subr.bf16.mxu0 0
    %651 = vmatpush1.bf16.msra.mxu0 0
    %652 = vmatprep.subr.bf16.mxu0 0
    %653 = vmatpush1.bf16.msra.mxu0 0
    %654 = vmatprep.subr.bf16.mxu0 0
    %655 = vmatpush1.bf16.msra.mxu0 0
    %656 = vmatprep.subr.bf16.mxu0 0
    %657 = vmatpush1.bf16.msra.mxu0 0
    %658 = vmatprep.subr.bf16.mxu0 0
    %659 = vmatpush1.bf16.msra.mxu0 0
    %660 = vmatprep.subr.bf16.mxu0 0
    %661 = vmatpush1.bf16.msra.mxu0 0
    %662 = vmatprep.subr.bf16.mxu0 0
    %663 = vmatpush1.bf16.msra.mxu0 %v646
    %664 = vmatprep.subr.bf16.mxu0 0
    %665 = vmatpush2.bf16.msra.mxu0 0
    %666 = vmatprep.subr.bf16.mxu0 0
    %667 = vmatpush2.bf16.msra.mxu0 0
    %668 = vmatprep.subr.bf16.mxu0 0
    %669 = vmatpush2.bf16.msra.mxu0 0
    %670 = vmatprep.subr.bf16.mxu0 0
    %671 = vmatpush2.bf16.msra.mxu0 0
    %672 = vmatprep.subr.bf16.mxu0 0
    %673 = vmatpush2.bf16.msra.mxu0 0
    %674 = vmatprep.subr.bf16.mxu0 0
    %675 = vmatpush2.bf16.msra.mxu0 0
    %676 = vmatprep.subr.bf16.mxu0 0
    %677 = vmatpush2.bf16.msra.mxu0 0
    %678 = vmatprep.subr.bf16.mxu0 0
    %679 = vmatpush2.bf16.msra.mxu0 0
    %680 = vmatprep.mubr.bf16.mxu0 0
    %681 = vmatmul.mubr.bf16.gmra.mxu0 %v637
    %v682 = vpop.f32.mrf.mxu0
    %v683 = vadd.f32 %v608, %v682
    %v684 = vpop.f32.mrf.mxu0
    %v685 = vpop.f32.mrf.mxu0
    %v686 = vadd.f32 %v613, %v685
    %v687 = vpop.f32.mrf.mxu0
    %688 = vmatprep.mubr.bf16.mxu0 0
    %689 = vmatmul.mubr.bf16.gmra.mxu0 %v640
    %v690 = vpop.f32.mrf.mxu0
    %v691 = vadd.f32 %v618, %v690
    %v692 = vpop.f32.mrf.mxu0
    %v693 = vpop.f32.mrf.mxu0
    %v694 = vadd.f32 %v623, %v693
    %v695 = vpop.f32.mrf.mxu0
    %696 = vdwg.mxu0
    %v697 = vadd.f32 %v583, %v683
    %v698 = vadd.f32 %v586, %v686
    %v699 = vadd.f32 %v591, %v691
    %v700 = vadd.f32 %v594, %v694
    %v701 = vmax.f32 %v697, 0.0
    %v702 = vmax.f32 %v698, 0.0
    %v703 = vmax.f32 %v699, 0.0
    %v704 = vmax.f32 %v700, 0.0
    %v705 = vpack.c.bf16 %v702, %v701
    %v706 = vpack.c.bf16 %v704, %v703
    %709 = vrot.lane.b32.xlu0 %v705, 9
    %v710 = vpop.permute.xlu0 %709
    %711 = vrot.lane.b32.xlu0 %v706, 9
    %v712 = vpop.permute.xlu0 %711
    %v717 = vmul.bf16 %v710, %v94
    %v718 = vmul.bf16 %v712, %v94
    %719 = vrot.lane.b32.xlu0 %v705, 8
    %v720 = vpop.permute.xlu0 %719
    %721 = vrot.lane.b32.xlu0 %v706, 8
    %v722 = vpop.permute.xlu0 %721
    %v727 = vmul.bf16 %v720, %v106
    %v728 = vmul.bf16 %v722, %v106
    %729 = vrot.lane.b32.xlu0 %v705, 7
    %v730 = vpop.permute.xlu0 %729
    %731 = vrot.lane.b32.xlu0 %v706, 7
    %v732 = vpop.permute.xlu0 %731
    %v737 = vmul.bf16 %v730, %v115
    %v738 = vmul.bf16 %v732, %v115
    %739 = vrot.lane.b32.xlu0 %v705, 1
    %v740 = vpop.permute.xlu0 %739
    %741 = vrot.lane.b32.xlu0 %v706, 1
    %v742 = vpop.permute.xlu0 %741
    %v747 = vmul.bf16 %v740, %v124
    %v748 = vmul.bf16 %v742, %v124
    %749 = vrot.lane.b32.xlu0 %v705, 127
    %v750 = vpop.permute.xlu0 %749
    %751 = vrot.lane.b32.xlu0 %v706, 127
    %v752 = vpop.permute.xlu0 %751
    %v757 = vmul.bf16 %v750, %v133
    %v758 = vmul.bf16 %v752, %v133
    %759 = vrot.lane.b32.xlu0 %v705, 121
    %v760 = vpop.permute.xlu0 %759
    %761 = vrot.lane.b32.xlu0 %v706, 121
    %v762 = vpop.permute.xlu0 %761
    %v767 = vmul.bf16 %v760, %v142
    %v768 = vmul.bf16 %v762, %v142
    %769 = vrot.lane.b32.xlu0 %v705, 120
    %v770 = vpop.permute.xlu0 %769
    %771 = vrot.lane.b32.xlu0 %v706, 120
    %v772 = vpop.permute.xlu0 %771
    %v777 = vmul.bf16 %v770, %v151
    %v778 = vmul.bf16 %v772, %v151
    %779 = vrot.lane.b32.xlu0 %v705, 119
    %v780 = vpop.permute.xlu0 %779
    %781 = vrot.lane.b32.xlu0 %v706, 119
    %v782 = vpop.permute.xlu0 %781
    %v787 = vmul.bf16 %v780, %v163
    %v788 = vmul.bf16 %v782, %v163
    %v789 = vld [vmem:[%s8] sm:$0xff]
    %v790 = vld [vmem:[%s8 + $0x8] sm:$0xf]
    %v791 = vld [vmem:[%s8 + $0xc] sm:$0xff]
    %v792 = vld [vmem:[%s8 + $0x14] sm:$0xf]
    %v793 = vld [vmem:[%s8 + $0x18] sm:$0xff]
    %v794 = vld [vmem:[%s8 + $0x20] sm:$0xf]
    %v795 = vld [vmem:[%s8 + $0x24] sm:$0xff]
    %v796 = vld [vmem:[%s8 + $0x2c] sm:$0xf]
    %v797 = vld [vmem:[%s9] sm:$0xff]
    %v798 = vld [vmem:[%s9 + $0x8] sm:$0xff]
    %v799 = vld [vmem:[%s9 + $0x10] sm:$0xff]
    %v800 = vld [vmem:[%s9 + $0x18] sm:$0xff]
    %802 = vset.pattern.permute.xlu0 0
    %803 = vperm.xlu0 %802, %v797
    %v804 = vpop.permute.xlu0 %803
    %807 = vset.pattern.permute.xlu0 0
    %808 = vperm.xlu0 %807, %v798
    %v809 = vpop.permute.xlu0 %808
    %812 = vset.pattern.permute.xlu0 0
    %813 = vperm.xlu0 %812, %v799
    %v814 = vpop.permute.xlu0 %813
    %817 = vset.pattern.permute.xlu0 0
    %818 = vperm.xlu0 %817, %v800
    %v819 = vpop.permute.xlu0 %818
    %v829 = vunpack.c.l.b16 %v789
    %v830 = vunpack.c.h.b16 %v789
    %v831 = vunpack.c.l.b16 %v790
    %v832 = vunpack.c.l.b16 %v791
    %v833 = vunpack.c.h.b16 %v791
    %v834 = vunpack.c.l.b16 %v792
    %v835 = vunpack.c.l.b16 %v793
    %v836 = vunpack.c.h.b16 %v793
    %v837 = vunpack.c.l.b16 %v794
    %v838 = vunpack.c.l.b16 %v795
    %v839 = vunpack.c.h.b16 %v795
    %v840 = vunpack.c.l.b16 %v796
    %v841 = vpack.c.b16 %v832, %v829
    %v842 = vpack.c.b16 %v833, %v830
    %v843 = vpack.c.b16 %v834, %v831
    %v844 = vpack.c.b16 %v838, %v835
    %v845 = vpack.c.b16 %v839, %v836
    %v846 = vpack.c.b16 %v840, %v837
    %v852 = vsel %vm492, %v843, 0
    %v855 = vsel %vm492, %v846, 0
    %857 = vmatprep.subr.bf16.mxu0 0
    %858 = vmatpush1.bf16.msra.mxu0 %v748
    %859 = vmatprep.subr.bf16.mxu0 0
    %860 = vmatpush1.bf16.msra.mxu0 %v747
    %861 = vmatprep.subr.bf16.mxu0 0
    %862 = vmatpush1.bf16.msra.mxu0 %v738
    %863 = vmatprep.subr.bf16.mxu0 0
    %864 = vmatpush1.bf16.msra.mxu0 %v737
    %865 = vmatprep.subr.bf16.mxu0 0
    %866 = vmatpush1.bf16.msra.mxu0 %v728
    %867 = vmatprep.subr.bf16.mxu0 0
    %868 = vmatpush1.bf16.msra.mxu0 %v727
    %869 = vmatprep.subr.bf16.mxu0 0
    %870 = vmatpush1.bf16.msra.mxu0 %v718
    %871 = vmatprep.subr.bf16.mxu0 0
    %872 = vmatpush1.bf16.msra.mxu0 %v717
    %873 = vmatprep.subr.bf16.mxu0 0
    %874 = vmatpush2.bf16.msra.mxu0 %v778
    %875 = vmatprep.subr.bf16.mxu0 0
    %876 = vmatpush2.bf16.msra.mxu0 %v777
    %877 = vmatprep.subr.bf16.mxu0 0
    %878 = vmatpush2.bf16.msra.mxu0 %v768
    %879 = vmatprep.subr.bf16.mxu0 0
    %880 = vmatpush2.bf16.msra.mxu0 %v767
    %881 = vmatprep.subr.bf16.mxu0 0
    %882 = vmatpush2.bf16.msra.mxu0 %v758
    %883 = vmatprep.subr.bf16.mxu0 0
    %884 = vmatpush2.bf16.msra.mxu0 %v757
    %885 = vmatprep.subr.bf16.mxu0 0
    %886 = vmatpush2.bf16.msra.mxu0 %v706
    %887 = vmatprep.subr.bf16.mxu0 0
    %888 = vmatpush2.bf16.msra.mxu0 %v705
    %889 = vmatprep.mubr.bf16.mxu0 %v842
    %890 = vmatmul.mubr.bf16.gmra.mxu0 %v841
    %v891 = vpop.f32.mrf.mxu0
    %v892 = vadd.f32 %v804, %v891
    %v893 = vpop.f32.mrf.mxu0
    %v894 = vpop.f32.mrf.mxu0
    %v895 = vadd.f32 %v809, %v894
    %v896 = vpop.f32.mrf.mxu0
    %897 = vmatprep.mubr.bf16.mxu0 %v845
    %898 = vmatmul.mubr.bf16.gmra.mxu0 %v844
    %v899 = vpop.f32.mrf.mxu0
    %v900 = vadd.f32 %v814, %v899
    %v901 = vpop.f32.mrf.mxu0
    %v902 = vpop.f32.mrf.mxu0
    %v903 = vadd.f32 %v819, %v902
    %v904 = vpop.f32.mrf.mxu0
    %905 = vdwg.mxu0
    %906 = vmatprep.subr.bf16.mxu0 0
    %907 = vmatpush1.bf16.msra.mxu0 0
    %908 = vmatprep.subr.bf16.mxu0 0
    %909 = vmatpush1.bf16.msra.mxu0 0
    %910 = vmatprep.subr.bf16.mxu0 0
    %911 = vmatpush1.bf16.msra.mxu0 0
    %912 = vmatprep.subr.bf16.mxu0 0
    %913 = vmatpush1.bf16.msra.mxu0 0
    %914 = vmatprep.subr.bf16.mxu0 0
    %915 = vmatpush1.bf16.msra.mxu0 0
    %916 = vmatprep.subr.bf16.mxu0 0
    %917 = vmatpush1.bf16.msra.mxu0 0
    %918 = vmatprep.subr.bf16.mxu0 0
    %919 = vmatpush1.bf16.msra.mxu0 %v788
    %920 = vmatprep.subr.bf16.mxu0 0
    %921 = vmatpush1.bf16.msra.mxu0 %v787
    %922 = vmatprep.subr.bf16.mxu0 0
    %923 = vmatpush2.bf16.msra.mxu0 0
    %924 = vmatprep.subr.bf16.mxu0 0
    %925 = vmatpush2.bf16.msra.mxu0 0
    %926 = vmatprep.subr.bf16.mxu0 0
    %927 = vmatpush2.bf16.msra.mxu0 0
    %928 = vmatprep.subr.bf16.mxu0 0
    %929 = vmatpush2.bf16.msra.mxu0 0
    %930 = vmatprep.subr.bf16.mxu0 0
    %931 = vmatpush2.bf16.msra.mxu0 0
    %932 = vmatprep.subr.bf16.mxu0 0
    %933 = vmatpush2.bf16.msra.mxu0 0
    %934 = vmatprep.subr.bf16.mxu0 0
    %935 = vmatpush2.bf16.msra.mxu0 0
    %936 = vmatprep.subr.bf16.mxu0 0
    %937 = vmatpush2.bf16.msra.mxu0 0
    %938 = vmatprep.mubr.bf16.mxu0 0
    %939 = vmatmul.mubr.bf16.gmra.mxu0 %v852
    %v940 = vpop.f32.mrf.mxu0
    %v941 = vadd.f32 %v892, %v940
    %v942 = vpop.f32.mrf.mxu0
    %v943 = vpop.f32.mrf.mxu0
    %v944 = vadd.f32 %v895, %v943
    %v945 = vpop.f32.mrf.mxu0
    %946 = vmatprep.mubr.bf16.mxu0 0
    %947 = vmatmul.mubr.bf16.gmra.mxu0 %v855
    %v948 = vpop.f32.mrf.mxu0
    %v949 = vadd.f32 %v900, %v948
    %v950 = vpop.f32.mrf.mxu0
    %v951 = vpop.f32.mrf.mxu0
    %v952 = vadd.f32 %v903, %v951
    %v953 = vpop.f32.mrf.mxu0
    %954 = vdwg.mxu0
    %v955 = vmax.f32 %v941, 0.0
    %v956 = vmax.f32 %v944, 0.0
    %v957 = vmax.f32 %v949, 0.0
    %v958 = vmax.f32 %v952, 0.0
    %v959 = vpack.c.bf16 %v956, %v955
    %v960 = vpack.c.bf16 %v958, %v957
    %963 = vrot.lane.b32.xlu0 %v959, 9
    %v964 = vpop.permute.xlu0 %963
    %965 = vrot.lane.b32.xlu0 %v960, 9
    %v966 = vpop.permute.xlu0 %965
    %v971 = vmul.bf16 %v964, %v94
    %v972 = vmul.bf16 %v966, %v94
    %973 = vrot.lane.b32.xlu0 %v959, 8
    %v974 = vpop.permute.xlu0 %973
    %975 = vrot.lane.b32.xlu0 %v960, 8
    %v976 = vpop.permute.xlu0 %975
    %v981 = vmul.bf16 %v974, %v106
    %v982 = vmul.bf16 %v976, %v106
    %983 = vrot.lane.b32.xlu0 %v959, 7
    %v984 = vpop.permute.xlu0 %983
    %985 = vrot.lane.b32.xlu0 %v960, 7
    %v986 = vpop.permute.xlu0 %985
    %v991 = vmul.bf16 %v984, %v115
    %v992 = vmul.bf16 %v986, %v115
    %993 = vrot.lane.b32.xlu0 %v959, 1
    %v994 = vpop.permute.xlu0 %993
    %995 = vrot.lane.b32.xlu0 %v960, 1
    %v996 = vpop.permute.xlu0 %995
    %v1001 = vmul.bf16 %v994, %v124
    %v1002 = vmul.bf16 %v996, %v124
    %1003 = vrot.lane.b32.xlu0 %v959, 127
    %v1004 = vpop.permute.xlu0 %1003
    %1005 = vrot.lane.b32.xlu0 %v960, 127
    %v1006 = vpop.permute.xlu0 %1005
    %v1011 = vmul.bf16 %v1004, %v133
    %v1012 = vmul.bf16 %v1006, %v133
    %1013 = vrot.lane.b32.xlu0 %v959, 121
    %v1014 = vpop.permute.xlu0 %1013
    %1015 = vrot.lane.b32.xlu0 %v960, 121
    %v1016 = vpop.permute.xlu0 %1015
    %v1021 = vmul.bf16 %v1014, %v142
    %v1022 = vmul.bf16 %v1016, %v142
    %1023 = vrot.lane.b32.xlu0 %v959, 120
    %v1024 = vpop.permute.xlu0 %1023
    %1025 = vrot.lane.b32.xlu0 %v960, 120
    %v1026 = vpop.permute.xlu0 %1025
    %v1031 = vmul.bf16 %v1024, %v151
    %v1032 = vmul.bf16 %v1026, %v151
    %1033 = vrot.lane.b32.xlu0 %v959, 119
    %v1034 = vpop.permute.xlu0 %1033
    %1035 = vrot.lane.b32.xlu0 %v960, 119
    %v1036 = vpop.permute.xlu0 %1035
    %v1041 = vmul.bf16 %v1034, %v163
    %v1042 = vmul.bf16 %v1036, %v163
    %v1043 = vld [vmem:[%s10] sm:$0xff]
    %v1044 = vld [vmem:[%s10 + $0x8] sm:$0xf]
    %v1045 = vld [vmem:[%s10 + $0xc] sm:$0xff]
    %v1046 = vld [vmem:[%s10 + $0x14] sm:$0xf]
    %v1047 = vld [vmem:[%s10 + $0x18] sm:$0xff]
    %v1048 = vld [vmem:[%s10 + $0x20] sm:$0xf]
    %v1049 = vld [vmem:[%s10 + $0x24] sm:$0xff]
    %v1050 = vld [vmem:[%s10 + $0x2c] sm:$0xf]
    %v1051 = vld [vmem:[%s11] sm:$0xff]
    %v1052 = vld [vmem:[%s11 + $0x8] sm:$0xff]
    %v1053 = vld [vmem:[%s11 + $0x10] sm:$0xff]
    %v1054 = vld [vmem:[%s11 + $0x18] sm:$0xff]
    %1056 = vset.pattern.permute.xlu0 0
    %1057 = vperm.xlu0 %1056, %v1051
    %v1058 = vpop.permute.xlu0 %1057
    %1061 = vset.pattern.permute.xlu0 0
    %1062 = vperm.xlu0 %1061, %v1052
    %v1063 = vpop.permute.xlu0 %1062
    %1066 = vset.pattern.permute.xlu0 0
    %1067 = vperm.xlu0 %1066, %v1053
    %v1068 = vpop.permute.xlu0 %1067
    %1071 = vset.pattern.permute.xlu0 0
    %1072 = vperm.xlu0 %1071, %v1054
    %v1073 = vpop.permute.xlu0 %1072
    %v1083 = vunpack.c.l.b16 %v1043
    %v1084 = vunpack.c.h.b16 %v1043
    %v1085 = vunpack.c.l.b16 %v1044
    %v1086 = vunpack.c.l.b16 %v1045
    %v1087 = vunpack.c.h.b16 %v1045
    %v1088 = vunpack.c.l.b16 %v1046
    %v1089 = vunpack.c.l.b16 %v1047
    %v1090 = vunpack.c.h.b16 %v1047
    %v1091 = vunpack.c.l.b16 %v1048
    %v1092 = vunpack.c.l.b16 %v1049
    %v1093 = vunpack.c.h.b16 %v1049
    %v1094 = vunpack.c.l.b16 %v1050
    %v1095 = vpack.c.b16 %v1086, %v1083
    %v1096 = vpack.c.b16 %v1087, %v1084
    %v1097 = vpack.c.b16 %v1088, %v1085
    %v1098 = vpack.c.b16 %v1092, %v1089
    %v1099 = vpack.c.b16 %v1093, %v1090
    %v1100 = vpack.c.b16 %v1094, %v1091
    %v1106 = vsel %vm492, %v1097, 0
    %v1109 = vsel %vm492, %v1100, 0
    %1111 = vmatprep.subr.bf16.mxu0 0
    %1112 = vmatpush1.bf16.msra.mxu0 %v1002
    %1113 = vmatprep.subr.bf16.mxu0 0
    %1114 = vmatpush1.bf16.msra.mxu0 %v1001
    %1115 = vmatprep.subr.bf16.mxu0 0
    %1116 = vmatpush1.bf16.msra.mxu0 %v992
    %1117 = vmatprep.subr.bf16.mxu0 0
    %1118 = vmatpush1.bf16.msra.mxu0 %v991
    %1119 = vmatprep.subr.bf16.mxu0 0
    %1120 = vmatpush1.bf16.msra.mxu0 %v982
    %1121 = vmatprep.subr.bf16.mxu0 0
    %1122 = vmatpush1.bf16.msra.mxu0 %v981
    %1123 = vmatprep.subr.bf16.mxu0 0
    %1124 = vmatpush1.bf16.msra.mxu0 %v972
    %1125 = vmatprep.subr.bf16.mxu0 0
    %1126 = vmatpush1.bf16.msra.mxu0 %v971
    %1127 = vmatprep.subr.bf16.mxu0 0
    %1128 = vmatpush2.bf16.msra.mxu0 %v1032
    %1129 = vmatprep.subr.bf16.mxu0 0
    %1130 = vmatpush2.bf16.msra.mxu0 %v1031
    %1131 = vmatprep.subr.bf16.mxu0 0
    %1132 = vmatpush2.bf16.msra.mxu0 %v1022
    %1133 = vmatprep.subr.bf16.mxu0 0
    %1134 = vmatpush2.bf16.msra.mxu0 %v1021
    %1135 = vmatprep.subr.bf16.mxu0 0
    %1136 = vmatpush2.bf16.msra.mxu0 %v1012
    %1137 = vmatprep.subr.bf16.mxu0 0
    %1138 = vmatpush2.bf16.msra.mxu0 %v1011
    %1139 = vmatprep.subr.bf16.mxu0 0
    %1140 = vmatpush2.bf16.msra.mxu0 %v960
    %1141 = vmatprep.subr.bf16.mxu0 0
    %1142 = vmatpush2.bf16.msra.mxu0 %v959
    %1143 = vmatprep.mubr.bf16.mxu0 %v1096
    %1144 = vmatmul.mubr.bf16.gmra.mxu0 %v1095
    %v1145 = vpop.f32.mrf.mxu0
    %v1146 = vadd.f32 %v1058, %v1145
    %v1147 = vpop.f32.mrf.mxu0
    %v1148 = vpop.f32.mrf.mxu0
    %v1149 = vadd.f32 %v1063, %v1148
    %v1150 = vpop.f32.mrf.mxu0
    %1151 = vmatprep.mubr.bf16.mxu0 %v1099
    %1152 = vmatmul.mubr.bf16.gmra.mxu0 %v1098
    %v1153 = vpop.f32.mrf.mxu0
    %v1154 = vadd.f32 %v1068, %v1153
    %v1155 = vpop.f32.mrf.mxu0
    %v1156 = vpop.f32.mrf.mxu0
    %v1157 = vadd.f32 %v1073, %v1156
    %v1158 = vpop.f32.mrf.mxu0
    %1159 = vdwg.mxu0
    %1160 = vmatprep.subr.bf16.mxu0 0
    %1161 = vmatpush1.bf16.msra.mxu0 0
    %1162 = vmatprep.subr.bf16.mxu0 0
    %1163 = vmatpush1.bf16.msra.mxu0 0
    %1164 = vmatprep.subr.bf16.mxu0 0
    %1165 = vmatpush1.bf16.msra.mxu0 0
    %1166 = vmatprep.subr.bf16.mxu0 0
    %1167 = vmatpush1.bf16.msra.mxu0 0
    %1168 = vmatprep.subr.bf16.mxu0 0
    %1169 = vmatpush1.bf16.msra.mxu0 0
    %1170 = vmatprep.subr.bf16.mxu0 0
    %1171 = vmatpush1.bf16.msra.mxu0 0
    %1172 = vmatprep.subr.bf16.mxu0 0
    %1173 = vmatpush1.bf16.msra.mxu0 %v1042
    %1174 = vmatprep.subr.bf16.mxu0 0
    %1175 = vmatpush1.bf16.msra.mxu0 %v1041
    %1176 = vmatprep.subr.bf16.mxu0 0
    %1177 = vmatpush2.bf16.msra.mxu0 0
    %1178 = vmatprep.subr.bf16.mxu0 0
    %1179 = vmatpush2.bf16.msra.mxu0 0
    %1180 = vmatprep.subr.bf16.mxu0 0
    %1181 = vmatpush2.bf16.msra.mxu0 0
    %1182 = vmatprep.subr.bf16.mxu0 0
    %1183 = vmatpush2.bf16.msra.mxu0 0
    %1184 = vmatprep.subr.bf16.mxu0 0
    %1185 = vmatpush2.bf16.msra.mxu0 0
    %1186 = vmatprep.subr.bf16.mxu0 0
    %1187 = vmatpush2.bf16.msra.mxu0 0
    %1188 = vmatprep.subr.bf16.mxu0 0
    %1189 = vmatpush2.bf16.msra.mxu0 0
    %1190 = vmatprep.subr.bf16.mxu0 0
    %1191 = vmatpush2.bf16.msra.mxu0 0
    %1192 = vmatprep.mubr.bf16.mxu0 0
    %1193 = vmatmul.mubr.bf16.gmra.mxu0 %v1106
    %v1194 = vpop.f32.mrf.mxu0
    %v1195 = vadd.f32 %v1146, %v1194
    %v1196 = vpop.f32.mrf.mxu0
    %v1197 = vpop.f32.mrf.mxu0
    %v1198 = vadd.f32 %v1149, %v1197
    %v1199 = vpop.f32.mrf.mxu0
    %1200 = vmatprep.mubr.bf16.mxu0 0
    %1201 = vmatmul.mubr.bf16.gmra.mxu0 %v1109
    %v1202 = vpop.f32.mrf.mxu0
    %v1203 = vadd.f32 %v1154, %v1202
    %v1204 = vpop.f32.mrf.mxu0
    %v1205 = vpop.f32.mrf.mxu0
    %v1206 = vadd.f32 %v1157, %v1205
    %v1207 = vpop.f32.mrf.mxu0
    %1208 = vdwg.mxu0
    %v1209 = vadd.f32 %v1195, %v701
    %v1210 = vadd.f32 %v1198, %v702
    %v1211 = vadd.f32 %v1203, %v703
    %v1212 = vadd.f32 %v1206, %v704
    %v1213 = vmax.f32 %v1209, 0.0
    %v1214 = vmax.f32 %v1210, 0.0
    %v1215 = vmax.f32 %v1211, 0.0
    %v1216 = vmax.f32 %v1212, 0.0
    %v1217 = vpack.c.bf16 %v1214, %v1213
    %v1218 = vpack.c.bf16 %v1216, %v1215
    %v1219 = vld [vmem:[%s12] sm:$0x3]
    %v1220 = vld [vmem:[%s13] sm:$0xf]
    %1222 = vset.pattern.permute.xlu0 0
    %1223 = vperm.xlu0 %1222, %v1220
    %v1224 = vpop.permute.xlu0 %1223
    %v1227 = vsel %vm492, %v1219, 0
    %1229 = vmatprep.subr.bf16.mxu0 0
    %1230 = vmatpush1.bf16.msra.mxu0 0
    %1231 = vmatprep.subr.bf16.mxu0 0
    %1232 = vmatpush1.bf16.msra.mxu0 0
    %1233 = vmatprep.subr.bf16.mxu0 0
    %1234 = vmatpush1.bf16.msra.mxu0 0
    %1235 = vmatprep.subr.bf16.mxu0 0
    %1236 = vmatpush1.bf16.msra.mxu0 0
    %1237 = vmatprep.subr.bf16.mxu0 0
    %1238 = vmatpush1.bf16.msra.mxu0 0
    %1239 = vmatprep.subr.bf16.mxu0 0
    %1240 = vmatpush1.bf16.msra.mxu0 0
    %1241 = vmatprep.subr.bf16.mxu0 0
    %1242 = vmatpush1.bf16.msra.mxu0 %v1218
    %1243 = vmatprep.subr.bf16.mxu0 0
    %1244 = vmatpush1.bf16.msra.mxu0 %v1217
    %1245 = vmatprep.subr.bf16.mxu0 0
    %1246 = vmatpush2.bf16.msra.mxu0 0
    %1247 = vmatprep.subr.bf16.mxu0 0
    %1248 = vmatpush2.bf16.msra.mxu0 0
    %1249 = vmatprep.subr.bf16.mxu0 0
    %1250 = vmatpush2.bf16.msra.mxu0 0
    %1251 = vmatprep.subr.bf16.mxu0 0
    %1252 = vmatpush2.bf16.msra.mxu0 0
    %1253 = vmatprep.subr.bf16.mxu0 0
    %1254 = vmatpush2.bf16.msra.mxu0 0
    %1255 = vmatprep.subr.bf16.mxu0 0
    %1256 = vmatpush2.bf16.msra.mxu0 0
    %1257 = vmatprep.subr.bf16.mxu0 0
    %1258 = vmatpush2.bf16.msra.mxu0 0
    %1259 = vmatprep.subr.bf16.mxu0 0
    %1260 = vmatpush2.bf16.msra.mxu0 0
    %1261 = vmatprep.mubr.bf16.mxu0 0
    %1262 = vmatmul.mubr.bf16.gmra.mxu0 %v1227
    %v1263 = vpop.f32.mrf.mxu0
    %v1264 = vadd.f32 %v1224, %v1263
    %v1265 = vpop.f32.mrf.mxu0
    %v1266 = vpop.f32.mrf.mxu0
    %v1267 = vpop.f32.mrf.mxu0
    %1268 = vdwg.mxu0
    %v1269 = vmax.f32 %v1264, 0.0
    %v1270 = vld [vmem:[%s16] sm:$0x1]
    %v1271 = vld [vmem:[%s17] sm:$0x3]
    %1273 = vset.pattern.permute.xlu0 0
    %1274 = vperm.xlu0 %1273, %v1271
    %v1275 = vpop.permute.xlu0 %1274
    %v1278 = vsel %vm492, %v1270, 0
    %1280 = vmatprep.subr.bf16.mxu0 0
    %1281 = vmatpush1.bf16.msra.mxu0 0
    %1282 = vmatprep.subr.bf16.mxu0 0
    %1283 = vmatpush1.bf16.msra.mxu0 0
    %1284 = vmatprep.subr.bf16.mxu0 0
    %1285 = vmatpush1.bf16.msra.mxu0 0
    %1286 = vmatprep.subr.bf16.mxu0 0
    %1287 = vmatpush1.bf16.msra.mxu0 0
    %1288 = vmatprep.subr.bf16.mxu0 0
    %1289 = vmatpush1.bf16.msra.mxu0 0
    %1290 = vmatprep.subr.bf16.mxu0 0
    %1291 = vmatpush1.bf16.msra.mxu0 0
    %1292 = vmatprep.subr.bf16.mxu0 0
    %1293 = vmatpush1.bf16.msra.mxu0 %v1218
    %1294 = vmatprep.subr.bf16.mxu0 0
    %1295 = vmatpush1.bf16.msra.mxu0 %v1217
    %1296 = vmatprep.subr.bf16.mxu0 0
    %1297 = vmatpush2.bf16.msra.mxu0 0
    %1298 = vmatprep.subr.bf16.mxu0 0
    %1299 = vmatpush2.bf16.msra.mxu0 0
    %1300 = vmatprep.subr.bf16.mxu0 0
    %1301 = vmatpush2.bf16.msra.mxu0 0
    %1302 = vmatprep.subr.bf16.mxu0 0
    %1303 = vmatpush2.bf16.msra.mxu0 0
    %1304 = vmatprep.subr.bf16.mxu0 0
    %1305 = vmatpush2.bf16.msra.mxu0 0
    %1306 = vmatprep.subr.bf16.mxu0 0
    %1307 = vmatpush2.bf16.msra.mxu0 0
    %1308 = vmatprep.subr.bf16.mxu0 0
    %1309 = vmatpush2.bf16.msra.mxu0 0
    %1310 = vmatprep.subr.bf16.mxu0 0
    %1311 = vmatpush2.bf16.msra.mxu0 0
    %1312 = vmatprep.mubr.bf16.mxu0 0
    %1313 = vmatmul.mubr.bf16.gmra.mxu0 %v1278
    %v1314 = vpop.f32.mrf.mxu0
    %v1315 = vadd.f32 %v1275, %v1314
    %v1316 = vpop.f32.mrf.mxu0
    %v1317 = vpop.f32.mrf.mxu0
    %v1318 = vpop.f32.mrf.mxu0
    %1319 = vdwg.mxu0
    %v1320 = vmax.f32 %v1315, 0.0
    %v1322 = vrot.slane %v1269, 1
    %1323 = vrot.lane.b32.xlu0 %v1322, 64
    %v1324 = vpop.permute.xlu0 %1323
    %v1326 = vrot.slane %v1269, 2
    %v1328 = vrot.slane %v1269, 3
    %1329 = vrot.lane.b32.xlu0 %v1328, 64
    %v1330 = vpop.permute.xlu0 %1329
    %vm1332 = vcmask 523264
    %v1333 = vsel %vm1332, %v1269, %v1324
    %v1334 = vsel %vm1332, %v1326, %v1330
    %1335 = vrot.lane.b32.xlu0 %v1269, 64
    %v1336 = vpop.permute.xlu0 %1335
    %1339 = vrot.lane.b32.xlu0 %v1326, 64
    %v1340 = vpop.permute.xlu0 %1339
    %v1343 = vsel %vm1332, %v1336, %v1322
    %v1344 = vsel %vm1332, %v1340, %v1328
    %v1347 = vrot.slane %v1343, 7
    %v1348 = vrot.slane %v1344, 7
    %vm1351 = vcmask 1040384
    %v1352 = vsel %vm1351, %v1333, %v1347
    %v1353 = vsel %vm1351, %v1334, %v1348
    %v1354 = vpack.c.bf16 %v1352, %v1352
    %v1355 = vpack.c.bf16 %v1353, %v1353
    %v1357 = vrot.slane %v1320, 1
    %1358 = vrot.lane.b32.xlu0 %v1357, 64
    %v1359 = vpop.permute.xlu0 %1358
    %v1361 = vsel %vm1332, %v1320, %v1359
    %1362 = vrot.lane.b32.xlu0 %v1320, 64
    %v1363 = vpop.permute.xlu0 %1362
    %v1366 = vsel %vm1332, %v1363, %v1357
    %v1368 = vrot.slane %v1366, 7
    %v1370 = vsel %vm1351, %v1361, %v1368
    %v1371 = vpack.c.bf16 %v1370, %v1370
    %v1372 = vld [vmem:[%s14] sm:$0xf]
    %v1373 = vld [vmem:[%s14 + $0x4] sm:$0xf]
    %v1374 = vld [vmem:[%s14 + $0x8] sm:$0xf]
    %v1375 = vld [vmem:[%s14 + $0xc] sm:$0xf]
    %v1376 = vld [vmem:[%s14 + $0x10] sm:$0xf]
    %v1377 = vld [vmem:[%s14 + $0x14] sm:$0xf]
    %v1378 = vld [vmem:[%s14 + $0x18] sm:$0xf]
    %v1379 = vld [vmem:[%s14 + $0x1c] sm:$0xf]
    %v1380 = vld [vmem:[%s14 + $0x20] sm:$0xf]
    %v1381 = vld [vmem:[%s14 + $0x24] sm:$0xf]
    %v1382 = vld [vmem:[%s14 + $0x28] sm:$0xf]
    %v1383 = vld [vmem:[%s14 + $0x2c] sm:$0xf]
    %v1384 = vld [vmem:[%s14 + $0x30] sm:$0xf]
    %v1385 = vld [vmem:[%s14 + $0x34] sm:$0xf]
    %v1386 = vld [vmem:[%s14 + $0x38] sm:$0xf]
    %v1387 = vld [vmem:[%s14 + $0x3c] sm:$0xf]
    %v1388 = vld [vmem:[%s14 + $0x40] sm:$0xf]
    %v1389 = vld [vmem:[%s14 + $0x44] sm:$0xf]
    %v1390 = vld [vmem:[%s14 + $0x48] sm:$0xf]
    %v1391 = vld [vmem:[%s14 + $0x4c] sm:$0xf]
    %v1392 = vld [vmem:[%s14 + $0x50] sm:$0xf]
    %v1393 = vld [vmem:[%s14 + $0x54] sm:$0xf]
    %v1394 = vld [vmem:[%s14 + $0x58] sm:$0xf]
    %v1395 = vld [vmem:[%s14 + $0x5c] sm:$0xf]
    %v1396 = vld [vmem:[%s14 + $0x60] sm:$0xf]
    %v1397 = vld [vmem:[%s14 + $0x64] sm:$0xf]
    %v1398 = vld [vmem:[%s14 + $0x68] sm:$0xf]
    %v1399 = vld [vmem:[%s14 + $0x6c] sm:$0xf]
    %v1400 = vld [vmem:[%s14 + $0x70] sm:$0xf]
    %v1401 = vld [vmem:[%s14 + $0x74] sm:$0xf]
    %v1402 = vld [vmem:[%s14 + $0x78] sm:$0xf]
    %v1403 = vld [vmem:[%s14 + $0x7c] sm:$0xf]
    %v1404 = vld [vmem:[%s15] sm:$0x1]
    %v1406 = vlaneseq
    %v1407 = vshrl.u32 %v1406, 7
    %v1408 = vsub.s32 0, %v1407
    %v1409 = vrot.slane %v1404, %v1408
    %v1443 = vunpack.c.l.b16 %v1372
    %v1444 = vunpack.c.l.b16 %v1373
    %v1445 = vunpack.c.l.b16 %v1374
    %v1446 = vunpack.c.l.b16 %v1375
    %v1447 = vunpack.c.l.b16 %v1376
    %v1448 = vunpack.c.l.b16 %v1377
    %v1449 = vunpack.c.l.b16 %v1378
    %v1450 = vunpack.c.l.b16 %v1379
    %v1451 = vunpack.c.l.b16 %v1380
    %v1452 = vunpack.c.l.b16 %v1381
    %v1453 = vunpack.c.l.b16 %v1382
    %v1454 = vunpack.c.l.b16 %v1383
    %v1455 = vunpack.c.l.b16 %v1384
    %v1456 = vunpack.c.l.b16 %v1385
    %v1457 = vunpack.c.l.b16 %v1386
    %v1458 = vunpack.c.l.b16 %v1387
    %v1459 = vunpack.c.l.b16 %v1388
    %v1460 = vunpack.c.l.b16 %v1389
    %v1461 = vunpack.c.l.b16 %v1390
    %v1462 = vunpack.c.l.b16 %v1391
    %v1463 = vunpack.c.l.b16 %v1392
    %v1464 = vunpack.c.l.b16 %v1393
    %v1465 = vunpack.c.l.b16 %v1394
    %v1466 = vunpack.c.l.b16 %v1395
    %v1467 = vunpack.c.l.b16 %v1396
    %v1468 = vunpack.c.l.b16 %v1397
    %v1469 = vunpack.c.l.b16 %v1398
    %v1470 = vunpack.c.l.b16 %v1399
    %v1471 = vunpack.c.l.b16 %v1400
    %v1472 = vunpack.c.l.b16 %v1401
    %v1473 = vunpack.c.l.b16 %v1402
    %v1474 = vunpack.c.l.b16 %v1403
    %v1475 = vpack.c.b16 %v1444, %v1443
    %v1476 = vpack.c.b16 %v1446, %v1445
    %v1477 = vpack.c.b16 %v1448, %v1447
    %v1478 = vpack.c.b16 %v1450, %v1449
    %v1479 = vpack.c.b16 %v1452, %v1451
    %v1480 = vpack.c.b16 %v1454, %v1453
    %v1481 = vpack.c.b16 %v1456, %v1455
    %v1482 = vpack.c.b16 %v1458, %v1457
    %v1483 = vpack.c.b16 %v1460, %v1459
    %v1484 = vpack.c.b16 %v1462, %v1461
    %v1485 = vpack.c.b16 %v1464, %v1463
    %v1486 = vpack.c.b16 %v1466, %v1465
    %v1487 = vpack.c.b16 %v1468, %v1467
    %v1488 = vpack.c.b16 %v1470, %v1469
    %v1489 = vpack.c.b16 %v1472, %v1471
    %v1490 = vpack.c.b16 %v1474, %v1473
    %1507 = vmatprep.subr.bf16.mxu0 0
    %1508 = vmatpush1.bf16.msra.mxu0 %v1482
    %1509 = vmatprep.subr.bf16.mxu0 0
    %1510 = vmatpush1.bf16.msra.mxu0 %v1481
    %1511 = vmatprep.subr.bf16.mxu0 0
    %1512 = vmatpush1.bf16.msra.mxu0 %v1480
    %1513 = vmatprep.subr.bf16.mxu0 0
    %1514 = vmatpush1.bf16.msra.mxu0 %v1479
    %1515 = vmatprep.subr.bf16.mxu0 0
    %1516 = vmatpush1.bf16.msra.mxu0 %v1478
    %1517 = vmatprep.subr.bf16.mxu0 0
    %1518 = vmatpush1.bf16.msra.mxu0 %v1477
    %1519 = vmatprep.subr.bf16.mxu0 0
    %1520 = vmatpush1.bf16.msra.mxu0 %v1476
    %1521 = vmatprep.subr.bf16.mxu0 0
    %1522 = vmatpush1.bf16.msra.mxu0 %v1475
    %1523 = vmatprep.subr.bf16.mxu0 0
    %1524 = vmatpush2.bf16.msra.mxu0 %v1490
    %1525 = vmatprep.subr.bf16.mxu0 0
    %1526 = vmatpush2.bf16.msra.mxu0 %v1489
    %1527 = vmatprep.subr.bf16.mxu0 0
    %1528 = vmatpush2.bf16.msra.mxu0 %v1488
    %1529 = vmatprep.subr.bf16.mxu0 0
    %1530 = vmatpush2.bf16.msra.mxu0 %v1487
    %1531 = vmatprep.subr.bf16.mxu0 0
    %1532 = vmatpush2.bf16.msra.mxu0 %v1486
    %1533 = vmatprep.subr.bf16.mxu0 0
    %1534 = vmatpush2.bf16.msra.mxu0 %v1485
    %1535 = vmatprep.subr.bf16.mxu0 0
    %1536 = vmatpush2.bf16.msra.mxu0 %v1484
    %1537 = vmatprep.subr.bf16.mxu0 0
    %1538 = vmatpush2.bf16.msra.mxu0 %v1483
    %1539 = vmatprep.mubr.bf16.mxu0 %v1355
    %1540 = vmatmul.mubr.bf16.gmra.mxu0 %v1354
    %v1541 = vpop.f32.mrf.mxu0
    %v1542 = vadd.f32 %v1409, %v1541
    %v1543 = vpop.f32.mrf.mxu0
    %v1544 = vpop.f32.mrf.mxu0
    %v1545 = vpop.f32.mrf.mxu0
    %1546 = vdwg.mxu0
    %vm1547 = vcmask 517120
    %1548 = vst.msk [vmem:[#allocation3] sm:$0x3] %vm1547, %v1542
    %v1549 = vld [vmem:[%s18] sm:$0xff]
    %v1550 = vld [vmem:[%s18 + $0x8] sm:$0xff]
    %v1551 = vld [vmem:[%s18 + $0x10] sm:$0xff]
    %v1552 = vld [vmem:[%s18 + $0x18] sm:$0xff]
    %v1553 = vld [vmem:[%s18 + $0x20] sm:$0xff]
    %v1554 = vld [vmem:[%s18 + $0x28] sm:$0xff]
    %v1555 = vld [vmem:[%s18 + $0x30] sm:$0xff]
    %v1556 = vld [vmem:[%s18 + $0x38] sm:$0xff]
    %v1557 = vld [vmem:[%s18 + $0x40] sm:$0xff]
    %v1558 = vld [vmem:[%s18 + $0x48] sm:$0xff]
    %v1559 = vld [vmem:[%s18 + $0x50] sm:$0xff]
    %v1560 = vld [vmem:[%s18 + $0x58] sm:$0xff]
    %v1561 = vld [vmem:[%s18 + $0x60] sm:$0xff]
    %v1562 = vld [vmem:[%s18 + $0x68] sm:$0xff]
    %v1563 = vld [vmem:[%s18 + $0x70] sm:$0xff]
    %v1564 = vld [vmem:[%s18 + $0x78] sm:$0xff]
    %v1565 = vld [vmem:[%s19] sm:$0x3]
    %v1567 = vlaneseq
    %v1568 = vshrl.u32 %v1567, 7
    %v1569 = vsub.s32 0, %v1568
    %v1570 = vrot.slane %v1565, %v1569
    %v1571 = vlaneseq
    %v1572 = vshrl.u32 %v1571, 7
    %v1573 = vsub.s32 1, %v1572
    %v1574 = vrot.slane %v1565, %v1573
    %v1593 = vunpack.c.l.b16 %v1549
    %v1594 = vunpack.c.h.b16 %v1549
    %v1595 = vunpack.c.l.b16 %v1550
    %v1596 = vunpack.c.h.b16 %v1550
    %v1597 = vunpack.c.l.b16 %v1551
    %v1598 = vunpack.c.h.b16 %v1551
    %v1599 = vunpack.c.l.b16 %v1552
    %v1600 = vunpack.c.h.b16 %v1552
    %v1601 = vunpack.c.l.b16 %v1553
    %v1602 = vunpack.c.h.b16 %v1553
    %v1603 = vunpack.c.l.b16 %v1554
    %v1604 = vunpack.c.h.b16 %v1554
    %v1605 = vunpack.c.l.b16 %v1555
    %v1606 = vunpack.c.h.b16 %v1555
    %v1607 = vunpack.c.l.b16 %v1556
    %v1608 = vunpack.c.h.b16 %v1556
    %v1609 = vunpack.c.l.b16 %v1557
    %v1610 = vunpack.c.h.b16 %v1557
    %v1611 = vunpack.c.l.b16 %v1558
    %v1612 = vunpack.c.h.b16 %v1558
    %v1613 = vunpack.c.l.b16 %v1559
    %v1614 = vunpack.c.h.b16 %v1559
    %v1615 = vunpack.c.l.b16 %v1560
    %v1616 = vunpack.c.h.b16 %v1560
    %v1617 = vunpack.c.l.b16 %v1561
    %v1618 = vunpack.c.h.b16 %v1561
    %v1619 = vunpack.c.l.b16 %v1562
    %v1620 = vunpack.c.h.b16 %v1562
    %v1621 = vunpack.c.l.b16 %v1563
    %v1622 = vunpack.c.h.b16 %v1563
    %v1623 = vunpack.c.l.b16 %v1564
    %v1624 = vunpack.c.h.b16 %v1564
    %v1625 = vpack.c.b16 %v1595, %v1593
    %v1626 = vpack.c.b16 %v1596, %v1594
    %v1627 = vpack.c.b16 %v1599, %v1597
    %v1628 = vpack.c.b16 %v1600, %v1598
    %v1629 = vpack.c.b16 %v1603, %v1601
    %v1630 = vpack.c.b16 %v1604, %v1602
    %v1631 = vpack.c.b16 %v1607, %v1605
    %v1632 = vpack.c.b16 %v1608, %v1606
    %v1633 = vpack.c.b16 %v1611, %v1609
    %v1634 = vpack.c.b16 %v1612, %v1610
    %v1635 = vpack.c.b16 %v1615, %v1613
    %v1636 = vpack.c.b16 %v1616, %v1614
    %v1637 = vpack.c.b16 %v1619, %v1617
    %v1638 = vpack.c.b16 %v1620, %v1618
    %v1639 = vpack.c.b16 %v1623, %v1621
    %v1640 = vpack.c.b16 %v1624, %v1622
    %1657 = vmatprep.subr.bf16.mxu0 %v1640
    %1658 = vmatpush1.bf16.msra.mxu0 %v1639
    %1659 = vmatprep.subr.bf16.mxu0 %v1638
    %1660 = vmatpush1.bf16.msra.mxu0 %v1637
    %1661 = vmatprep.subr.bf16.mxu0 %v1636
    %1662 = vmatpush1.bf16.msra.mxu0 %v1635
    %1663 = vmatprep.subr.bf16.mxu0 %v1634
    %1664 = vmatpush1.bf16.msra.mxu0 %v1633
    %1665 = vmatprep.subr.bf16.mxu0 %v1632
    %1666 = vmatpush1.bf16.msra.mxu0 %v1631
    %1667 = vmatprep.subr.bf16.mxu0 %v1630
    %1668 = vmatpush1.bf16.msra.mxu0 %v1629
    %1669 = vmatprep.subr.bf16.mxu0 %v1628
    %1670 = vmatpush1.bf16.msra.mxu0 %v1627
    %1671 = vmatprep.subr.bf16.mxu0 %v1626
    %1672 = vmatpush1.bf16.msra.mxu0 %v1625
    %1673 = vmatprep.subr.bf16.mxu0 0
    %1674 = vmatpush2.bf16.msra.mxu0 0
    %1675 = vmatprep.subr.bf16.mxu0 0
    %1676 = vmatpush2.bf16.msra.mxu0 0
    %1677 = vmatprep.subr.bf16.mxu0 0
    %1678 = vmatpush2.bf16.msra.mxu0 0
    %1679 = vmatprep.subr.bf16.mxu0 0
    %1680 = vmatpush2.bf16.msra.mxu0 0
    %1681 = vmatprep.subr.bf16.mxu0 0
    %1682 = vmatpush2.bf16.msra.mxu0 0
    %1683 = vmatprep.subr.bf16.mxu0 0
    %1684 = vmatpush2.bf16.msra.mxu0 0
    %1685 = vmatprep.subr.bf16.mxu0 0
    %1686 = vmatpush2.bf16.msra.mxu0 0
    %1687 = vmatprep.subr.bf16.mxu0 0
    %1688 = vmatpush2.bf16.msra.mxu0 0
    %1689 = vmatprep.mubr.bf16.mxu0 0
    %1690 = vmatmul.mubr.bf16.gmra.mxu0 %v1371
    %v1691 = vpop.f32.mrf.mxu0
    %v1692 = vadd.f32 %v1570, %v1691
    %v1693 = vpop.f32.mrf.mxu0
    %v1694 = vadd.f32 %v1574, %v1693
    %v1695 = vpop.f32.mrf.mxu0
    %v1696 = vpop.f32.mrf.mxu0
    %1697 = vdwg.mxu0
    %v1698 = vmax.f32 %v1692, 0.0
    %v1699 = vmax.f32 %v1694, 0.0
    %v1700 = vpack.c.bf16 %v1698, %v1698
    %v1701 = vpack.c.bf16 %v1699, %v1699
    %v1702 = vld [vmem:[%s20] sm:$0xf]
    %v1703 = vld [vmem:[%s20 + $0x4] sm:$0xf]
    %v1704 = vld [vmem:[%s20 + $0x8] sm:$0xf]
    %v1705 = vld [vmem:[%s20 + $0xc] sm:$0xf]
    %v1706 = vld [vmem:[%s20 + $0x10] sm:$0xf]
    %v1707 = vld [vmem:[%s20 + $0x14] sm:$0xf]
    %v1708 = vld [vmem:[%s20 + $0x18] sm:$0xf]
    %v1709 = vld [vmem:[%s20 + $0x1c] sm:$0xf]
    %v1710 = vld [vmem:[%s20 + $0x20] sm:$0xf]
    %v1711 = vld [vmem:[%s20 + $0x24] sm:$0xf]
    %v1712 = vld [vmem:[%s20 + $0x28] sm:$0xf]
    %v1713 = vld [vmem:[%s20 + $0x2c] sm:$0xf]
    %v1714 = vld [vmem:[%s20 + $0x30] sm:$0xf]
    %v1715 = vld [vmem:[%s20 + $0x34] sm:$0xf]
    %v1716 = vld [vmem:[%s20 + $0x38] sm:$0xf]
    %v1717 = vld [vmem:[%s20 + $0x3c] sm:$0xf]
    %v1718 = vld [vmem:[%s20 + $0x40] sm:$0xf]
    %v1719 = vld [vmem:[%s20 + $0x44] sm:$0xf]
    %v1720 = vld [vmem:[%s20 + $0x48] sm:$0xf]
    %v1721 = vld [vmem:[%s20 + $0x4c] sm:$0xf]
    %v1722 = vld [vmem:[%s20 + $0x50] sm:$0xf]
    %v1723 = vld [vmem:[%s20 + $0x54] sm:$0xf]
    %v1724 = vld [vmem:[%s20 + $0x58] sm:$0xf]
    %v1725 = vld [vmem:[%s20 + $0x5c] sm:$0xf]
    %v1726 = vld [vmem:[%s20 + $0x60] sm:$0xf]
    %v1727 = vld [vmem:[%s20 + $0x64] sm:$0xf]
    %v1728 = vld [vmem:[%s20 + $0x68] sm:$0xf]
    %v1729 = vld [vmem:[%s20 + $0x6c] sm:$0xf]
    %v1730 = vld [vmem:[%s20 + $0x70] sm:$0xf]
    %v1731 = vld [vmem:[%s20 + $0x74] sm:$0xf]
    %v1732 = vld [vmem:[%s20 + $0x78] sm:$0xf]
    %v1733 = vld [vmem:[%s20 + $0x7c] sm:$0xf]
    %v1734 = vld [vmem:[#allocation2] sm:$0x1]
    %v1736 = vlaneseq
    %v1737 = vshrl.u32 %v1736, 7
    %v1738 = vsub.s32 0, %v1737
    %v1739 = vrot.slane %v1734, %v1738
    %v1773 = vunpack.c.l.b16 %v1702
    %v1774 = vunpack.c.l.b16 %v1703
    %v1775 = vunpack.c.l.b16 %v1704
    %v1776 = vunpack.c.l.b16 %v1705
    %v1777 = vunpack.c.l.b16 %v1706
    %v1778 = vunpack.c.l.b16 %v1707
    %v1779 = vunpack.c.l.b16 %v1708
    %v1780 = vunpack.c.l.b16 %v1709
    %v1781 = vunpack.c.l.b16 %v1710
    %v1782 = vunpack.c.l.b16 %v1711
    %v1783 = vunpack.c.l.b16 %v1712
    %v1784 = vunpack.c.l.b16 %v1713
    %v1785 = vunpack.c.l.b16 %v1714
    %v1786 = vunpack.c.l.b16 %v1715
    %v1787 = vunpack.c.l.b16 %v1716
    %v1788 = vunpack.c.l.b16 %v1717
    %v1789 = vunpack.c.l.b16 %v1718
    %v1790 = vunpack.c.l.b16 %v1719
    %v1791 = vunpack.c.l.b16 %v1720
    %v1792 = vunpack.c.l.b16 %v1721
    %v1793 = vunpack.c.l.b16 %v1722
    %v1794 = vunpack.c.l.b16 %v1723
    %v1795 = vunpack.c.l.b16 %v1724
    %v1796 = vunpack.c.l.b16 %v1725
    %v1797 = vunpack.c.l.b16 %v1726
    %v1798 = vunpack.c.l.b16 %v1727
    %v1799 = vunpack.c.l.b16 %v1728
    %v1800 = vunpack.c.l.b16 %v1729
    %v1801 = vunpack.c.l.b16 %v1730
    %v1802 = vunpack.c.l.b16 %v1731
    %v1803 = vunpack.c.l.b16 %v1732
    %v1804 = vunpack.c.l.b16 %v1733
    %v1805 = vpack.c.b16 %v1774, %v1773
    %v1806 = vpack.c.b16 %v1776, %v1775
    %v1807 = vpack.c.b16 %v1778, %v1777
    %v1808 = vpack.c.b16 %v1780, %v1779
    %v1809 = vpack.c.b16 %v1782, %v1781
    %v1810 = vpack.c.b16 %v1784, %v1783
    %v1811 = vpack.c.b16 %v1786, %v1785
    %v1812 = vpack.c.b16 %v1788, %v1787
    %v1813 = vpack.c.b16 %v1790, %v1789
    %v1814 = vpack.c.b16 %v1792, %v1791
    %v1815 = vpack.c.b16 %v1794, %v1793
    %v1816 = vpack.c.b16 %v1796, %v1795
    %v1817 = vpack.c.b16 %v1798, %v1797
    %v1818 = vpack.c.b16 %v1800, %v1799
    %v1819 = vpack.c.b16 %v1802, %v1801
    %v1820 = vpack.c.b16 %v1804, %v1803
    %1837 = vmatprep.subr.bf16.mxu0 0
    %1838 = vmatpush1.bf16.msra.mxu0 %v1812
    %1839 = vmatprep.subr.bf16.mxu0 0
    %1840 = vmatpush1.bf16.msra.mxu0 %v1811
    %1841 = vmatprep.subr.bf16.mxu0 0
    %1842 = vmatpush1.bf16.msra.mxu0 %v1810
    %1843 = vmatprep.subr.bf16.mxu0 0
    %1844 = vmatpush1.bf16.msra.mxu0 %v1809
    %1845 = vmatprep.subr.bf16.mxu0 0
    %1846 = vmatpush1.bf16.msra.mxu0 %v1808
    %1847 = vmatprep.subr.bf16.mxu0 0
    %1848 = vmatpush1.bf16.msra.mxu0 %v1807
    %1849 = vmatprep.subr.bf16.mxu0 0
    %1850 = vmatpush1.bf16.msra.mxu0 %v1806
    %1851 = vmatprep.subr.bf16.mxu0 0
    %1852 = vmatpush1.bf16.msra.mxu0 %v1805
    %1853 = vmatprep.subr.bf16.mxu0 0
    %1854 = vmatpush2.bf16.msra.mxu0 %v1820
    %1855 = vmatprep.subr.bf16.mxu0 0
    %1856 = vmatpush2.bf16.msra.mxu0 %v1819
    %1857 = vmatprep.subr.bf16.mxu0 0
    %1858 = vmatpush2.bf16.msra.mxu0 %v1818
    %1859 = vmatprep.subr.bf16.mxu0 0
    %1860 = vmatpush2.bf16.msra.mxu0 %v1817
    %1861 = vmatprep.subr.bf16.mxu0 0
    %1862 = vmatpush2.bf16.msra.mxu0 %v1816
    %1863 = vmatprep.subr.bf16.mxu0 0
    %1864 = vmatpush2.bf16.msra.mxu0 %v1815
    %1865 = vmatprep.subr.bf16.mxu0 0
    %1866 = vmatpush2.bf16.msra.mxu0 %v1814
    %1867 = vmatprep.subr.bf16.mxu0 0
    %1868 = vmatpush2.bf16.msra.mxu0 %v1813
    %1869 = vmatprep.mubr.bf16.mxu0 %v1701
    %1870 = vmatmul.mubr.bf16.gmra.mxu0 %v1700
    %v1871 = vpop.f32.mrf.mxu0
    %v1872 = vadd.f32 %v1739, %v1871
    %v1873 = vpop.f32.mrf.mxu0
    %v1874 = vpop.f32.mrf.mxu0
    %v1875 = vpop.f32.mrf.mxu0
    %1876 = vdwg.mxu0
    %v1877 = vtanh.pop %v1872
    %vm1878 = vcmask 1024
    %1879 = vst.msk [vmem:[%s23] sm:$0x3] %vm1878, %v1877
    // Predicated region
    $region90: #{az_forward.1} parent=1 // pred_check
      _
    $region91: #{az_forward.1} parent=1 // pred_check_branch
      %1881 = sbr.rel (0) target = $region93
    $region92: #{az_forward.1} parent=1 // pred_region
      %s1883 = ssub.s32 32, 32
      %1884 = vsyncadd [#allocation4], %s1883
      %s1886 = sshll.u32 [#allocation3], 4
      %s1887 = int_to_ptr.vmem [resolvable:$true] %s1886
      %1889 = dma.vmem_to_hbm [thread:$0]  %s1887, 32, %s22, [#allocation4]
    $region93: #{az_forward.1} parent=1 // pred_fallthru
      _
    // Predicated region
    $region94: #{az_forward.1} parent=1 // pred_check
      _
    $region95: #{az_forward.1} parent=1 // pred_check_branch
      %1891 = sbr.rel (0) target = $region97
    $region96: #{az_forward.1} parent=1 // pred_region
      _
    $region97: #{az_forward.1} parent=1 // pred_fallthru
      _
    // Predicated region
    $region98: #{az_forward.1} parent=1 // pred_check
      _
    $region99: #{az_forward.1} parent=1 // pred_check_branch
      %1893 = sbr.rel (0) target = $region101
    $region100: #{az_forward.1} parent=1 // pred_region
      %1894 = dma.done [#allocation4], 32
    $region101: #{az_forward.1} parent=1 // pred_fallthru
      _
    // Predicated region
    $region102: #{az_forward.1} parent=1 // pred_check
      _
    $region103: #{az_forward.1} parent=1 // pred_check_branch
      %1896 = sbr.rel (0) target = $region105
    $region104: #{az_forward.1} parent=1 // pred_region
      _
    $region105: #{az_forward.1} parent=1 // pred_fallthru
      _
    %1897 = vsyncpa [#allocation4], 1

</llo_original>
